<compile_context>
chip_gen: v7x
topology: tpu7x:2x2x1
jax: 0.10.0
libtpu: 0.0.40
codegen_flags: <defaults>
</compile_context>

<pallas_src>
import functools

import jax
import jax.numpy as jnp
import numpy as np
from jax.experimental import pallas as pl
from jax.experimental.pallas import tpu as pltpu

_VMEM_LIMIT = 48 * 1024 * 1024       # headroom below v7x's 64 MiB physical VMEM
_COMPUTE_DTYPE = jnp.bfloat16        # MXU operand dtype (accumulation stays f32)


def _pick_row_tile(n):
    # Largest row tile (capped at 256 for v5e's 16 MiB scoped VMEM) dividing n.
    for t in (256, 128, 64, 32, 16, 8):
        if n % t == 0:
            return t
    return n


def _pick_batch_tile(bs, k_len, target_rows=256):
    # Largest batch tile with B_TILE*K rows <= target and >= 4 grid steps
    # (>= 2 per v7x TensorCore); fall back to >= 2 steps, then 1.
    def best_with(min_steps):
        best = 0
        for bt in range(1, bs + 1):
            if bs % bt == 0 and bt * k_len <= target_rows and bs // bt >= min_steps:
                best = bt
        return best
    return best_with(4) or best_with(2) or 1


# ----------------------------------------------------------------------------
# Kernel 1: fused embed(+relu) and K|V projection over all bs*P rows.
#   kv = relu(x @ We + be) @ Wkv + bkv     (or kv = x @ Wkv + bkv if F_in == D)
# ----------------------------------------------------------------------------
def _embed_kv_kernel(x_ref, we_ref, be_ref, wkv_ref, bkv_ref, kv_ref):
    e = jnp.dot(x_ref[...].astype(we_ref.dtype), we_ref[...],
                preferred_element_type=jnp.float32) + be_ref[...]
    e = jnp.maximum(e, 0.0)
    kv = jnp.dot(e.astype(wkv_ref.dtype), wkv_ref[...],
                 preferred_element_type=jnp.float32) + bkv_ref[...]
    kv_ref[...] = kv.astype(kv_ref.dtype)


def _kv_kernel(x_ref, wkv_ref, bkv_ref, kv_ref):
    kv = jnp.dot(x_ref[...].astype(wkv_ref.dtype), wkv_ref[...],
                 preferred_element_type=jnp.float32) + bkv_ref[...]
    kv_ref[...] = kv.astype(kv_ref.dtype)


def _project_kv(x2d, wkv, bkv, we=None, be=None):
    n, f_in = x2d.shape
    two_d = wkv.shape[1]
    tn = _pick_row_tile(n)
    cp = pltpu.CompilerParams(dimension_semantics=("parallel",),
                              vmem_limit_bytes=_VMEM_LIMIT)
    if we is not None:
        d = we.shape[1]
        return pl.pallas_call(
            _embed_kv_kernel,
            out_shape=jax.ShapeDtypeStruct((n, two_d), _COMPUTE_DTYPE),
            grid=(n // tn,),
            in_specs=[
                pl.BlockSpec((tn, f_in), lambda i: (i, 0)),
                pl.BlockSpec((f_in, d), lambda i: (0, 0)),
                pl.BlockSpec((1, d), lambda i: (0, 0)),
                pl.BlockSpec((d, two_d), lambda i: (0, 0)),
                pl.BlockSpec((1, two_d), lambda i: (0, 0)),
            ],
            out_specs=pl.BlockSpec((tn, two_d), lambda i: (i, 0)),
            compiler_params=cp,
        )(x2d, we, be, wkv, bkv)
    return pl.pallas_call(
        _kv_kernel,
        out_shape=jax.ShapeDtypeStruct((n, two_d), _COMPUTE_DTYPE),
        grid=(n // tn,),
        in_specs=[
            pl.BlockSpec((tn, f_in), lambda i: (i, 0)),
            pl.BlockSpec((f_in, two_d), lambda i: (0, 0)),
            pl.BlockSpec((1, two_d), lambda i: (0, 0)),
        ],
        out_specs=pl.BlockSpec((tn, two_d), lambda i: (i, 0)),
        compiler_params=cp,
    )(x2d, wkv, bkv)


# ----------------------------------------------------------------------------
# Kernel 2: one ML-Decoder layer + GroupFC, B_TILE batch elements per grid step.
# ----------------------------------------------------------------------------
def _decoder_kernel(kv_ref, q_ref, t1_ref, wo_ref, w1_ref, w2_ref,
                    vec_ref, b1_ref, wph_ref, out_ref, ascore_ref, *, nhead):
    kv = kv_ref[...]                       # (BT, P, 2D) bf16: [K | V] per row
    bt, p_len, _ = kv.shape
    q = q_ref[...]                         # (K, D) bf16, 1/sqrt(dh) pre-folded
    t1 = t1_ref[...]                       # (K, D) f32 (batch-invariant, precomputed)
    k_len, d = q.shape
    dh = d // nhead

    vecs = vec_ref[...]                    # (8, D) f32: packed small vectors
    bo, ln2g, ln2b, ln3g, ln3b, b2 = (vecs[0], vecs[1], vecs[2],
                                      vecs[3], vecs[4], vecs[5])

    def layer_norm(v, g, b):
        mu = jnp.mean(v, axis=-1, keepdims=True)
        c = v - mu
        var = jnp.mean(c * c, axis=-1, keepdims=True)
        return c * jax.lax.rsqrt(var + 1e-5) * g + b

    # ---- multi-head cross attention (per-head softmax) ----
    a_sum = jnp.zeros((bt, k_len, p_len), jnp.float32)
    head_outs = []
    for h in range(nhead):                 # static unroll; nhead is small
        lo = h * dh
        qh = jnp.broadcast_to(q[:, lo:lo + dh], (bt, k_len, dh))
        kh = kv[:, :, lo:lo + dh]
        vh = kv[:, :, d + lo:d + lo + dh]
        s = jnp.einsum('bkd,bpd->bkp', qh, kh,
                       preferred_element_type=jnp.float32)          # (BT, K, P)
        s = s - jnp.max(s, axis=-1, keepdims=True)
        e = jnp.exp(s)
        w = e * pl.reciprocal(jnp.sum(e, axis=-1, keepdims=True), approx=True)
        a_sum = a_sum + w
        head_outs.append(jnp.einsum('bkp,bpd->bkd', w.astype(kv.dtype), vh,
                                    preferred_element_type=jnp.float32))
    ascore_ref[...] = (a_sum * (1.0 / nhead)).astype(ascore_ref.dtype)

    # ---- single output projection over stacked (BT*K, D) rows ----
    attn = jnp.concatenate(head_outs, axis=-1).reshape(bt * k_len, d)
    attn = jnp.dot(attn.astype(wo_ref.dtype), wo_ref[...],
                   preferred_element_type=jnp.float32) + bo
    t1_rows = jnp.broadcast_to(t1[None], (bt, k_len, d)).reshape(bt * k_len, d)
    t2 = layer_norm(t1_rows + attn, ln2g, ln2b)

    # ---- feed-forward + LN3 ----
    ff = jnp.dot(t2.astype(w1_ref.dtype), w1_ref[...],
                 preferred_element_type=jnp.float32) + b1_ref[...]
    ff = jnp.maximum(ff, 0.0)
    ff = jnp.dot(ff.astype(w2_ref.dtype), w2_ref[...],
                 preferred_element_type=jnp.float32) + b2
    hdec = layer_norm(t2 + ff, ln3g, ln3b).reshape(bt, k_len, d)

    # ---- GroupFC, hdec half only (the tgt half is batch-invariant and folded
    # into the bias in the wrapper).  duplicate_factor is tiny, so VPU multiply
    # + lane reduction beats a <=dup-lane-wide MXU matmul.
    wph = wph_ref[...].astype(jnp.float32)               # (dup, K, D)
    dup = wph.shape[0]
    cols = [jnp.sum(hdec * wph[f], axis=-1) for f in range(dup)]   # each (BT, K)
    if dup == 1:
        out2d = cols[0]
    else:
        out2d = jnp.stack(cols, axis=-1).reshape(bt, k_len * dup)
    out_ref[0] = out2d.astype(out_ref.dtype)


def _decoder_groupfc(kv, q, t1, wo, w1, w2, vec_pack, b1, wph, *, nhead, b_tile):
    bs, p_len, two_d = kv.shape
    d = two_d // 2
    k_len = q.shape[0]
    d_ff = w1.shape[1]
    dup = wph.shape[0]
    steps = bs // b_tile

    kernel = functools.partial(_decoder_kernel, nhead=nhead)
    out3, a_score = pl.pallas_call(
        kernel,
        out_shape=(
            jax.ShapeDtypeStruct((steps, b_tile, k_len * dup), jnp.float32),
            jax.ShapeDtypeStruct((bs, k_len, p_len), jnp.float32),
        ),
        grid=(steps,),
        in_specs=[
            pl.BlockSpec((b_tile, p_len, two_d), lambda b: (b, 0, 0)),  # kv (per-batch)
            pl.BlockSpec((k_len, d), lambda b: (0, 0)),                 # q (scaled, bf16)
            pl.BlockSpec((k_len, d), lambda b: (0, 0)),                 # t1 (f32)
            pl.BlockSpec((d, d), lambda b: (0, 0)),                     # wo
            pl.BlockSpec((d, d_ff), lambda b: (0, 0)),                  # w1
            pl.BlockSpec((d_ff, d), lambda b: (0, 0)),                  # w2
            pl.BlockSpec((8, d), lambda b: (0, 0)),                     # packed vectors
            pl.BlockSpec((1, d_ff), lambda b: (0, 0)),                  # b1
            pl.BlockSpec((dup, k_len, d), lambda b: (0, 0, 0)),         # wph
        ],
        out_specs=(
            pl.BlockSpec((1, b_tile, k_len * dup), lambda b: (b, 0, 0)),
            pl.BlockSpec((b_tile, k_len, p_len), lambda b: (b, 0, 0)),
        ),
        compiler_params=pltpu.CompilerParams(
            dimension_semantics=("parallel",),     # batch steps split across TensorCores
            vmem_limit_bytes=_VMEM_LIMIT,
        ),
    )(kv, q, t1, wo, w1, w2, vec_pack, b1, wph)
    return out3.reshape(bs, k_len * dup), a_score


# ----------------------------------------------------------------------------
# Full forward wrapper (eval mode, zsl=0, cls_token=False)
# ----------------------------------------------------------------------------
def mcat_decoder_forward(x, y, params, *, nhead=2):
    if x.ndim == 4:                      # (bs, C, H, W) -> (bs, H*W, C)
        b, c, hh, ww = x.shape
        x = x.reshape(b, c, hh * ww).transpose(0, 2, 1)
    elif x.ndim == 2:                    # (patch, F) -> (1, patch, F)
        x = x[None]
    x = x.astype(jnp.float32)
    bs, p_len, f_in = x.shape
    k_len, d = y.shape
    dh = d // nhead
    num_classes = params["bp"].shape[0]
    cdt = _COMPUTE_DTYPE

    # ---- batch-invariant prologue (hoisted out of the per-batch grid) ----
    def ln(v, g, b):
        mu = v.mean(-1, keepdims=True)
        var = ((v - mu) ** 2).mean(-1, keepdims=True)
        return (v - mu) * jax.lax.rsqrt(var + 1e-5) * g + b

    t1 = ln(2.0 * y, params["ln1g"], params["ln1b"]).astype(jnp.float32)
    q = ((t1 @ params["wq"] + params["bq"]) * (1.0 / np.sqrt(dh))).astype(cdt)

    wkv = jnp.concatenate([params["wk"], params["wv"]], axis=1).astype(cdt)   # (D, 2D)
    bkv = jnp.concatenate([params["bk"], params["bv"]]).reshape(1, 2 * d)     # (1, 2D)
    wo = params["wo"].astype(cdt)
    w1 = params["w1"].astype(cdt)
    w2 = params["w2"].astype(cdt)
    d_ff = w1.shape[1]
    b1 = params["b1"].reshape(1, d_ff).astype(jnp.float32)

    vec_pack = jnp.concatenate(
        [jnp.stack([params["bo"], params["ln2g"], params["ln2b"],
                    params["ln3g"], params["ln3b"], params["b2"]], axis=0),
         jnp.zeros((2, d), jnp.float32)], axis=0)                             # (8, D)

    dup = params["wp"].shape[2]
    wph = jnp.transpose(params["wp"][:, :d, :], (2, 0, 1)).astype(cdt)        # (dup, K, D)
    # tgt half of GroupFC is batch-invariant -> fold into the output bias.
    tgt_pool = jnp.einsum("kd,kdf->kf", y, params["wp"][:, d:, :])            # (K, dup)
    bias_full = tgt_pool.reshape(-1)[:num_classes] + params["bp"]

    # ---- kernel 1: fused embed(+relu) and K|V projection over all bs*P rows ----
    if f_in != d:                          # self.standard == True
        kv = _project_kv(x.reshape(bs * p_len, f_in), wkv, bkv,
                         we=params["we"].astype(cdt),
                         be=params["be"].reshape(1, d).astype(jnp.float32))
    else:
        kv = _project_kv(x.reshape(bs * p_len, f_in), wkv, bkv)
    kv = kv.reshape(bs, p_len, 2 * d)

    # ---- kernel 2: decoder layer + GroupFC, B_TILE samples per grid step ----
    b_tile = _pick_batch_tile(bs, k_len)
    out2d, a_score = _decoder_groupfc(kv, q, t1, wo, w1, w2, vec_pack, b1, wph,
                                      nhead=nhead, b_tile=b_tile)

    # flatten(1)[:, :num_classes] + (tgt-half GroupFC + duplicate_pooling_bias)
    logits = out2d[:, :num_classes] + bias_full.reshape(1, num_classes)
    cls_token = []                        # cls_token=False in this configuration
    return logits, cls_token, a_score


# ----------------------------------------------------------------------------
# Pure-JAX reference (mirrors the PyTorch eval-mode forward, f32 throughout)
# ----------------------------------------------------------------------------
def reference_forward(x, y, p, *, nhead=2):
    if x.ndim == 4:
        b, c, hh, ww = x.shape
        x = x.reshape(b, c, hh * ww).transpose(0, 2, 1)
    elif x.ndim == 2:
        x = x[None]
    bs, p_len, f_in = x.shape
    k_len, d = y.shape
    dh = d // nhead
    num_classes = p["bp"].shape[0]

    if f_in != d:
        mem = jax.nn.relu(jnp.einsum("bpf,fd->bpd", x, p["we"]) + p["be"])
    else:
        mem = x

    def ln(v, g, b):
        mu = v.mean(-1, keepdims=True)
        var = ((v - mu) ** 2).mean(-1, keepdims=True)
        return (v - mu) / jnp.sqrt(var + 1e-5) * g + b

    t1 = ln(2.0 * y, p["ln1g"], p["ln1b"])                            # (K, D)
    q = t1 @ p["wq"] + p["bq"]
    k = jnp.einsum("bpf,fd->bpd", mem, p["wk"]) + p["bk"]
    v = jnp.einsum("bpf,fd->bpd", mem, p["wv"]) + p["bv"]

    qh = q.reshape(k_len, nhead, dh).transpose(1, 0, 2)               # (H, K, dh)
    kh = k.reshape(bs, p_len, nhead, dh).transpose(0, 2, 1, 3)        # (bs, H, P, dh)
    vh = v.reshape(bs, p_len, nhead, dh).transpose(0, 2, 1, 3)
    s = jnp.einsum("hkd,bhpd->bhkp", qh / np.sqrt(dh), kh)
    w = jax.nn.softmax(s, axis=-1)
    a_score = w.mean(axis=1)                                          # (bs, K, P)
    o = jnp.einsum("bhkp,bhpd->bhkd", w, vh)
    o = o.transpose(0, 2, 1, 3).reshape(bs, k_len, d)
    attn = o @ p["wo"] + p["bo"]

    t2 = ln(t1[None] + attn, p["ln2g"], p["ln2b"])
    ffn = jax.nn.relu(t2 @ p["w1"] + p["b1"]) @ p["w2"] + p["b2"]
    h = ln(t2 + ffn, p["ln3g"], p["ln3b"])                            # (bs, K, D)

    hcat = jnp.concatenate([h, jnp.broadcast_to(y, (bs, k_len, d))], axis=-1)
    out_e = jnp.einsum("bkc,kcf->bkf", hcat, p["wp"])                 # (bs, K, dup)
    logits = out_e.reshape(bs, -1)[:, :num_classes] + p["bp"]
    return logits, a_score


if __name__ == "__main__":
    # Small but TPU-layout-friendly shapes (lane dim multiples of 128, head_dim=128).
    BS, PATCH, F_IN = 8, 16, 512
    D_EMBED, D_FF = 256, 256                   # dim_feedforward == d_decoder_embed (per module)
    NHEAD = 2
    K_LABEL = 8                                # num_label_embed
    NUM_CLASSES = 8
    DUP = int(NUM_CLASSES / K_LABEL + 0.999)   # duplicate_factor (== 1 here)

    key = jax.random.PRNGKey(0)
    keys = jax.random.split(key, 24)

    def unif(kk, shape, fan_in):
        lim = 1.0 / np.sqrt(fan_in)
        return jax.random.uniform(kk, shape, jnp.float32, -lim, lim)

    x = jax.random.normal(keys[0], (BS, PATCH, F_IN), jnp.float32)
    y = 0.5 * jax.random.normal(keys[1], (K_LABEL, D_EMBED), jnp.float32)

    xavier_std = float(np.sqrt(2.0 / (2 * D_EMBED + DUP)))
    params = dict(
        we=unif(keys[2], (F_IN, D_EMBED), F_IN),
        be=unif(keys[3], (D_EMBED,), F_IN),
        wq=unif(keys[4], (D_EMBED, D_EMBED), D_EMBED),
        bq=unif(keys[5], (D_EMBED,), D_EMBED),
        wk=unif(keys[6], (D_EMBED, D_EMBED), D_EMBED),
        bk=unif(keys[7], (D_EMBED,), D_EMBED),
        wv=unif(keys[8], (D_EMBED, D_EMBED), D_EMBED),
        bv=unif(keys[9], (D_EMBED,), D_EMBED),
        wo=unif(keys[10], (D_EMBED, D_EMBED), D_EMBED),
        bo=unif(keys[11], (D_EMBED,), D_EMBED),
        ln1g=1.0 + 0.1 * jax.random.normal(keys[12], (D_EMBED,), jnp.float32),
        ln1b=0.1 * jax.random.normal(keys[13], (D_EMBED,), jnp.float32),
        ln2g=1.0 + 0.1 * jax.random.normal(keys[14], (D_EMBED,), jnp.float32),
        ln2b=0.1 * jax.random.normal(keys[15], (D_EMBED,), jnp.float32),
        ln3g=1.0 + 0.1 * jax.random.normal(keys[16], (D_EMBED,), jnp.float32),
        ln3b=0.1 * jax.random.normal(keys[17], (D_EMBED,), jnp.float32),
        w1=unif(keys[18], (D_EMBED, D_FF), D_EMBED),
        b1=unif(keys[19], (D_FF,), D_EMBED),
        w2=unif(keys[20], (D_FF, D_EMBED), D_FF),
        b2=unif(keys[21], (D_EMBED,), D_FF),
        wp=xavier_std * jax.random.normal(keys[22], (K_LABEL, 2 * D_EMBED, DUP), jnp.float32),
        bp=0.01 * jax.random.normal(keys[23], (NUM_CLASSES,), jnp.float32),
    )

    logits, cls_tok, a_score = mcat_decoder_forward(x, y, params, nhead=NHEAD)
    logits = jax.block_until_ready(logits)
    a_score = jax.block_until_ready(a_score)

    ref_logits, ref_a = reference_forward(x, y, params, nhead=NHEAD)

    assert logits.shape == (BS, NUM_CLASSES)
    assert a_score.shape == (BS, K_LABEL, PATCH)
    assert cls_tok == []
    # Tolerances account for bf16 MXU operands (f32 accumulation), the bf16
    # kv intermediate, and the approximate EUP reciprocal in the softmax,
    # all compared against an all-f32 reference.
    np.testing.assert_allclose(np.asarray(logits), np.asarray(ref_logits),
                               rtol=5e-2, atol=5e-2)
    np.testing.assert_allclose(np.asarray(a_score), np.asarray(ref_a),
                               rtol=2e-2, atol=2e-3)

    print("KERNEL_OK")
</pallas_src>

<mosaic_0001>
module attributes {stable_mosaic.version = 11 : i64} {
  func.func @_embed_kv_kernel(%arg0: i32, %arg1: memref<128x512xf32, #tpu.memory_space<vmem>>, %arg2: memref<512x256xbf16, #tpu.memory_space<vmem>>, %arg3: memref<1x256xf32, #tpu.memory_space<vmem>>, %arg4: memref<256x512xbf16, #tpu.memory_space<vmem>>, %arg5: memref<1x512xf32, #tpu.memory_space<vmem>>, %arg6: memref<128x512xbf16, #tpu.memory_space<vmem>>) attributes {dimension_semantics = [#tpu.dimension_semantics<parallel>], iteration_bounds = array<i64: 1>, scalar_prefetch = 0 : i64, scratch_operands = 0 : i64, tpu.core_type = #tpu.core_type<tc>, window_params = [{transform_indices = @transform_0, window_bounds = array<i64: 128, 512>}, {pipeline_mode = #tpu.pipeline_mode<synchronous>, transform_indices = @transform_1, window_bounds = array<i64: 512, 256>}, {pipeline_mode = #tpu.pipeline_mode<synchronous>, transform_indices = @transform_2, window_bounds = array<i64: 1, 256>}, {pipeline_mode = #tpu.pipeline_mode<synchronous>, transform_indices = @transform_3, window_bounds = array<i64: 256, 512>}, {pipeline_mode = #tpu.pipeline_mode<synchronous>, transform_indices = @transform_4, window_bounds = array<i64: 1, 512>}, {transform_indices = @transform_5, window_bounds = array<i64: 128, 512>}]} {
    %c0 = arith.constant 0 : index
    %c0_0 = arith.constant 0 : index
    %0 = vector.load %arg1[%c0, %c0_0] : memref<128x512xf32, #tpu.memory_space<vmem>>, vector<128x512xf32>
    %1 = arith.truncf %0 : vector<128x512xf32> to vector<128x512xbf16>
    %c0_1 = arith.constant 0 : index
    %c0_2 = arith.constant 0 : index
    %2 = vector.load %arg2[%c0_1, %c0_2] : memref<512x256xbf16, #tpu.memory_space<vmem>>, vector<512x256xbf16>
    %cst = arith.constant dense<0.000000e+00> : vector<128x256xf32>
    %3 = tpu.matmul %1, %2, %cst {dimension_numbers = #tpu.dot_dimension_numbers<[1], [0], [0], [1], [0, 0, 1, 1], [], []>} : vector<128x512xbf16>, vector<512x256xbf16>, vector<128x256xf32> -> vector<128x256xf32>
    %c0_3 = arith.constant 0 : index
    %c0_4 = arith.constant 0 : index
    %4 = vector.load %arg3[%c0_3, %c0_4] : memref<1x256xf32, #tpu.memory_space<vmem>>, vector<1x256xf32>
    %5 = vector.broadcast %4 : vector<1x256xf32> to vector<128x256xf32>
    %6 = arith.addf %3, %5 : vector<128x256xf32>
    %cst_5 = arith.constant 0.000000e+00 : f32
    %7 = vector.broadcast %cst_5 : f32 to vector<128x256xf32>
    %8 = arith.maximumf %6, %7 : vector<128x256xf32>
    %9 = arith.truncf %8 : vector<128x256xf32> to vector<128x256xbf16>
    %c0_6 = arith.constant 0 : index
    %c0_7 = arith.constant 0 : index
    %10 = vector.load %arg4[%c0_6, %c0_7] : memref<256x512xbf16, #tpu.memory_space<vmem>>, vector<256x512xbf16>
    %cst_8 = arith.constant dense<0.000000e+00> : vector<128x512xf32>
    %11 = tpu.matmul %9, %10, %cst_8 {dimension_numbers = #tpu.dot_dimension_numbers<[1], [0], [0], [1], [0, 0, 1, 1], [], []>} : vector<128x256xbf16>, vector<256x512xbf16>, vector<128x512xf32> -> vector<128x512xf32>
    %c0_9 = arith.constant 0 : index
    %c0_10 = arith.constant 0 : index
    %12 = vector.load %arg5[%c0_9, %c0_10] : memref<1x512xf32, #tpu.memory_space<vmem>>, vector<1x512xf32>
    %13 = vector.broadcast %12 : vector<1x512xf32> to vector<128x512xf32>
    %14 = arith.addf %11, %13 : vector<128x512xf32>
    %15 = arith.truncf %14 : vector<128x512xf32> to vector<128x512xbf16>
    %c0_11 = arith.constant 0 : index
    %c0_12 = arith.constant 0 : index
    %16 = vector.load %arg6[%c0_11, %c0_12] : memref<128x512xbf16, #tpu.memory_space<vmem>>, vector<128x512xbf16>
    tpu.vector_store %arg6[%c0_11, %c0_12], %15 {strides = array<i32>} : memref<128x512xbf16, #tpu.memory_space<vmem>>, vector<128x512xbf16>,
    return
  }
  func.func @transform_0(%arg0: i32) -> (i32, i32) {
    %c0_i32 = arith.constant 0 : i32
    %c0_i32_0 = arith.constant 0 : i32
    return %arg0, %c0_i32 : i32, i32
  }
  func.func @transform_1(%arg0: i32) -> (i32, i32) {
    %c0_i32 = arith.constant 0 : i32
    %c0_i32_0 = arith.constant 0 : i32
    %c0_i32_1 = arith.constant 0 : i32
    return %c0_i32, %c0_i32_0 : i32, i32
  }
  func.func @transform_2(%arg0: i32) -> (i32, i32) {
    %c0_i32 = arith.constant 0 : i32
    %c0_i32_0 = arith.constant 0 : i32
    %c0_i32_1 = arith.constant 0 : i32
    return %c0_i32, %c0_i32_0 : i32, i32
  }
  func.func @transform_3(%arg0: i32) -> (i32, i32) {
    %c0_i32 = arith.constant 0 : i32
    %c0_i32_0 = arith.constant 0 : i32
    %c0_i32_1 = arith.constant 0 : i32
    return %c0_i32, %c0_i32_0 : i32, i32
  }
  func.func @transform_4(%arg0: i32) -> (i32, i32) {
    %c0_i32 = arith.constant 0 : i32
    %c0_i32_0 = arith.constant 0 : i32
    %c0_i32_1 = arith.constant 0 : i32
    return %c0_i32, %c0_i32_0 : i32, i32
  }
  func.func @transform_5(%arg0: i32) -> (i32, i32) {
    %c0_i32 = arith.constant 0 : i32
    %c0_i32_0 = arith.constant 0 : i32
    return %arg0, %c0_i32 : i32, i32
  }
}

</mosaic_0001>

<llo_original>
// kernel: tpu_custom_call.1
$region0: #{tpu_custom_call.1}
  #allocation0 [shape = 'u32[]', space=smem, size = 0x4, offset = 0x4, fixed_abs, tag = 'smem constant byte address 0x4 - core index']
  #allocation1 [shape = 'u32[144,128]{1,0:T(1,128)}', space=vmem, size = 0x12000, scoped, tag = 'internal scratch']
  %s0 = inlined_call_operand.hbm [shape: f32[128,512], index: 0, kind: input, shape index: {}]
  %s1 = inlined_call_operand.hbm [shape: bf16[512,256], index: 1, kind: input, shape index: {}]
  %s2 = inlined_call_operand.vmem [shape: f32[1,256], index: 2, kind: input, shape index: {}]
  %s3 = inlined_call_operand.hbm [shape: bf16[256,512], index: 3, kind: input, shape index: {}]
  %s4 = inlined_call_operand.vmem [shape: f32[1,512], index: 4, kind: input, shape index: {}]
  %s5 = inlined_call_operand.hbm [shape: bf16[128,512], index: 5, kind: output, shape index: {}]
  %s6 = sld [smem:[#allocation0]]
  $region42: #{tpu_custom_call.1} parent=0
    _
  %s8 = ssub.s32 1, %s6
  %s9 = scalar_select 0, %s8, %s6
  $region1: #{tpu_custom_call.1} parent=0
    #allocation2 [shape = 'u8[262144]{0}', space=vmem, size = 0x40000, scoped, tag = 'input window, operand 0, single buffered']
    #allocation3 [shape = 's32[1]{0}', space=sflag, size = 0x4, scoped, tag = 'scoped memory for tpu_custom_call.1']
    #allocation4 [shape = 's32[1]{0}', space=sflag, size = 0x4, scoped, tag = 'scoped memory for tpu_custom_call.1']
    #allocation5 [shape = 'u8[262144]{0}', space=vmem, size = 0x40000, scoped, tag = 'input window, operand 1, single buffered']
    #allocation6 [shape = 's32[1]{0}', space=sflag, size = 0x4, scoped, tag = 'scoped memory for tpu_custom_call.1']
    #allocation7 [shape = 'u8[262144]{0}', space=vmem, size = 0x40000, scoped, tag = 'input window, operand 3, single buffered']
    #allocation8 [shape = 'u8[131072]{0}', space=vmem, size = 0x20000, scoped, tag = 'output window, operand 0, single buffered']
    %10 = vsyncpa [#allocation3], 0
    %11 = vsyncpa [#allocation6], 0
    %12 = vsyncpa [#allocation4], 0
    // Predicated region
    $region2: #{tpu_custom_call.1} parent=1 // pred_check
      _
    $region3: #{tpu_custom_call.1} parent=1 // pred_check_branch
      %14 = sbr.rel (0) target = $region5
    $region4: #{tpu_custom_call.1} parent=1 // pred_region
      %s16 = ssub.s32 8192, 8192
      %17 = vsyncadd [#allocation3], %s16
      %s18 = sshll.u32 [#allocation2], 4
      %s19 = int_to_ptr.vmem [resolvable:$true] %s18
      %24 = dma.hbm_to_vmem [thread:$0]  %s0, 8192, %s19, [#allocation3], 512, 512, 32
    $region5: #{tpu_custom_call.1} parent=1 // pred_fallthru
      _
    // Predicated region
    $region6: #{tpu_custom_call.1} parent=1 // pred_check
      _
    $region7: #{tpu_custom_call.1} parent=1 // pred_check_branch
      %26 = sbr.rel (0) target = $region9
    $region8: #{tpu_custom_call.1} parent=1 // pred_region
      %s28 = ssub.s32 8192, 8192
      %29 = vsyncadd [#allocation6], %s28
      %s30 = sshll.u32 [#allocation5], 4
      %s31 = int_to_ptr.vmem [resolvable:$true] %s30
      %36 = dma.hbm_to_vmem [thread:$0]  %s1, 8192, %s31, [#allocation6], 128, 128, 8
    $region9: #{tpu_custom_call.1} parent=1 // pred_fallthru
      _
    // Predicated region
    $region10: #{tpu_custom_call.1} parent=1 // pred_check
      _
    $region11: #{tpu_custom_call.1} parent=1 // pred_check_branch
      %38 = sbr.rel (0) target = $region13
    $region12: #{tpu_custom_call.1} parent=1 // pred_region
      _
    $region13: #{tpu_custom_call.1} parent=1 // pred_fallthru
      _
    // Predicated region
    $region14: #{tpu_custom_call.1} parent=1 // pred_check
      _
    $region15: #{tpu_custom_call.1} parent=1 // pred_check_branch
      %40 = sbr.rel (0) target = $region17
    $region16: #{tpu_custom_call.1} parent=1 // pred_region
      %s42 = ssub.s32 8192, 8192
      %43 = vsyncadd [#allocation6], %s42
      %s44 = sshll.u32 [#allocation7], 4
      %s45 = int_to_ptr.vmem [resolvable:$true] %s44
      %50 = dma.hbm_to_vmem [thread:$0]  %s3, 8192, %s45, [#allocation6], 256, 256, 16
    $region17: #{tpu_custom_call.1} parent=1 // pred_fallthru
      _
    // Predicated region
    $region18: #{tpu_custom_call.1} parent=1 // pred_check
      _
    $region19: #{tpu_custom_call.1} parent=1 // pred_check_branch
      %52 = sbr.rel (0) target = $region21
    $region20: #{tpu_custom_call.1} parent=1 // pred_region
      _
    $region21: #{tpu_custom_call.1} parent=1 // pred_fallthru
      _
    // Predicated region
    $region22: #{tpu_custom_call.1} parent=1 // pred_check
      _
    $region23: #{tpu_custom_call.1} parent=1 // pred_check_branch
      %54 = sbr.rel (0) target = $region25
    $region24: #{tpu_custom_call.1} parent=1 // pred_region
      %55 = dma.done [#allocation3], 8192
    $region25: #{tpu_custom_call.1} parent=1 // pred_fallthru
      _
    // Predicated region
    $region26: #{tpu_custom_call.1} parent=1 // pred_check
      _
    $region27: #{tpu_custom_call.1} parent=1 // pred_check_branch
      %57 = sbr.rel (0) target = $region29
    $region28: #{tpu_custom_call.1} parent=1 // pred_region
      %58 = dma.done [#allocation6], 8192
    $region29: #{tpu_custom_call.1} parent=1 // pred_fallthru
      _
    // Predicated region
    $region30: #{tpu_custom_call.1} parent=1 // pred_check
      _
    $region31: #{tpu_custom_call.1} parent=1 // pred_check_branch
      %60 = sbr.rel (0) target = $region33
    $region32: #{tpu_custom_call.1} parent=1 // pred_region
      %61 = dma.done [#allocation6], 8192
    $region33: #{tpu_custom_call.1} parent=1 // pred_fallthru
      _
    %v62 = vld [vmem:[#allocation2] sm:$0xff]
    %v63 = vld [vmem:[#allocation2 + $0x8] sm:$0xff]
    %v64 = vld [vmem:[#allocation2 + $0x10] sm:$0xff]
    %v65 = vld [vmem:[#allocation2 + $0x18] sm:$0xff]
    %v66 = vld [vmem:[#allocation2 + $0x20] sm:$0xff]
    %v67 = vld [vmem:[#allocation2 + $0x28] sm:$0xff]
    %v68 = vld [vmem:[#allocation2 + $0x30] sm:$0xff]
    %v69 = vld [vmem:[#allocation2 + $0x38] sm:$0xff]
    %v70 = vld [vmem:[#allocation2 + $0x40] sm:$0xff]
    %v71 = vld [vmem:[#allocation2 + $0x48] sm:$0xff]
    %v72 = vld [vmem:[#allocation2 + $0x50] sm:$0xff]
    %v73 = vld [vmem:[#allocation2 + $0x58] sm:$0xff]
    %v74 = vld [vmem:[#allocation2 + $0x60] sm:$0xff]
    %v75 = vld [vmem:[#allocation2 + $0x68] sm:$0xff]
    %v76 = vld [vmem:[#allocation2 + $0x70] sm:$0xff]
    %v77 = vld [vmem:[#allocation2 + $0x78] sm:$0xff]
    %v78 = vld [vmem:[#allocation2 + $0x80] sm:$0xff]
    %v79 = vld [vmem:[#allocation2 + $0x88] sm:$0xff]
    %v80 = vld [vmem:[#allocation2 + $0x90] sm:$0xff]
    %v81 = vld [vmem:[#allocation2 + $0x98] sm:$0xff]
    %v82 = vld [vmem:[#allocation2 + $0xa0] sm:$0xff]
    %v83 = vld [vmem:[#allocation2 + $0xa8] sm:$0xff]
    %v84 = vld [vmem:[#allocation2 + $0xb0] sm:$0xff]
    %v85 = vld [vmem:[#allocation2 + $0xb8] sm:$0xff]
    %v86 = vld [vmem:[#allocation2 + $0xc0] sm:$0xff]
    %v87 = vld [vmem:[#allocation2 + $0xc8] sm:$0xff]
    %v88 = vld [vmem:[#allocation2 + $0xd0] sm:$0xff]
    %v89 = vld [vmem:[#allocation2 + $0xd8] sm:$0xff]
    %v90 = vld [vmem:[#allocation2 + $0xe0] sm:$0xff]
    %v91 = vld [vmem:[#allocation2 + $0xe8] sm:$0xff]
    %v92 = vld [vmem:[#allocation2 + $0xf0] sm:$0xff]
    %v93 = vld [vmem:[#allocation2 + $0xf8] sm:$0xff]
    %v94 = vld [vmem:[#allocation2 + $0x100] sm:$0xff]
    %v95 = vld [vmem:[#allocation2 + $0x108] sm:$0xff]
    %v96 = vld [vmem:[#allocation2 + $0x110] sm:$0xff]
    %v97 = vld [vmem:[#allocation2 + $0x118] sm:$0xff]
    %v98 = vld [vmem:[#allocation2 + $0x120] sm:$0xff]
    %v99 = vld [vmem:[#allocation2 + $0x128] sm:$0xff]
    %v100 = vld [vmem:[#allocation2 + $0x130] sm:$0xff]
    %v101 = vld [vmem:[#allocation2 + $0x138] sm:$0xff]
    %v102 = vld [vmem:[#allocation2 + $0x140] sm:$0xff]
    %v103 = vld [vmem:[#allocation2 + $0x148] sm:$0xff]
    %v104 = vld [vmem:[#allocation2 + $0x150] sm:$0xff]
    %v105 = vld [vmem:[#allocation2 + $0x158] sm:$0xff]
    %v106 = vld [vmem:[#allocation2 + $0x160] sm:$0xff]
    %v107 = vld [vmem:[#allocation2 + $0x168] sm:$0xff]
    %v108 = vld [vmem:[#allocation2 + $0x170] sm:$0xff]
    %v109 = vld [vmem:[#allocation2 + $0x178] sm:$0xff]
    %v110 = vld [vmem:[#allocation2 + $0x180] sm:$0xff]
    %v111 = vld [vmem:[#allocation2 + $0x188] sm:$0xff]
    %v112 = vld [vmem:[#allocation2 + $0x190] sm:$0xff]
    %v113 = vld [vmem:[#allocation2 + $0x198] sm:$0xff]
    %v114 = vld [vmem:[#allocation2 + $0x1a0] sm:$0xff]
    %v115 = vld [vmem:[#allocation2 + $0x1a8] sm:$0xff]
    %v116 = vld [vmem:[#allocation2 + $0x1b0] sm:$0xff]
    %v117 = vld [vmem:[#allocation2 + $0x1b8] sm:$0xff]
    %v118 = vld [vmem:[#allocation2 + $0x1c0] sm:$0xff]
    %v119 = vld [vmem:[#allocation2 + $0x1c8] sm:$0xff]
    %v120 = vld [vmem:[#allocation2 + $0x1d0] sm:$0xff]
    %v121 = vld [vmem:[#allocation2 + $0x1d8] sm:$0xff]
    %v122 = vld [vmem:[#allocation2 + $0x1e0] sm:$0xff]
    %v123 = vld [vmem:[#allocation2 + $0x1e8] sm:$0xff]
    %v124 = vld [vmem:[#allocation2 + $0x1f0] sm:$0xff]
    %v125 = vld [vmem:[#allocation2 + $0x1f8] sm:$0xff]
    %v126 = vpack.c.bf16 %v66, %v62
    %v127 = vpack.c.bf16 %v67, %v63
    %v128 = vpack.c.bf16 %v68, %v64
    %v129 = vpack.c.bf16 %v69, %v65
    %v130 = vpack.c.bf16 %v74, %v70
    %v131 = vpack.c.bf16 %v75, %v71
    %v132 = vpack.c.bf16 %v76, %v72
    %v133 = vpack.c.bf16 %v77, %v73
    %v134 = vpack.c.bf16 %v82, %v78
    %v135 = vpack.c.bf16 %v83, %v79
    %v136 = vpack.c.bf16 %v84, %v80
    %v137 = vpack.c.bf16 %v85, %v81
    %v138 = vpack.c.bf16 %v90, %v86
    %v139 = vpack.c.bf16 %v91, %v87
    %v140 = vpack.c.bf16 %v92, %v88
    %v141 = vpack.c.bf16 %v93, %v89
    %v142 = vpack.c.bf16 %v98, %v94
    %v143 = vpack.c.bf16 %v99, %v95
    %v144 = vpack.c.bf16 %v100, %v96
    %v145 = vpack.c.bf16 %v101, %v97
    %v146 = vpack.c.bf16 %v106, %v102
    %v147 = vpack.c.bf16 %v107, %v103
    %v148 = vpack.c.bf16 %v108, %v104
    %v149 = vpack.c.bf16 %v109, %v105
    %v150 = vpack.c.bf16 %v114, %v110
    %v151 = vpack.c.bf16 %v115, %v111
    %v152 = vpack.c.bf16 %v116, %v112
    %v153 = vpack.c.bf16 %v117, %v113
    %v154 = vpack.c.bf16 %v122, %v118
    %v155 = vpack.c.bf16 %v123, %v119
    %v156 = vpack.c.bf16 %v124, %v120
    %v157 = vpack.c.bf16 %v125, %v121
    %v158 = vld [vmem:[#allocation5] sm:$0xff]
    %v159 = vld [vmem:[#allocation5 + $0x8] sm:$0xff]
    %v160 = vld [vmem:[#allocation5 + $0x10] sm:$0xff]
    %v161 = vld [vmem:[#allocation5 + $0x18] sm:$0xff]
    %v162 = vld [vmem:[#allocation5 + $0x20] sm:$0xff]
    %v163 = vld [vmem:[#allocation5 + $0x28] sm:$0xff]
    %v164 = vld [vmem:[#allocation5 + $0x30] sm:$0xff]
    %v165 = vld [vmem:[#allocation5 + $0x38] sm:$0xff]
    %v166 = vld [vmem:[#allocation5 + $0x40] sm:$0xff]
    %v167 = vld [vmem:[#allocation5 + $0x48] sm:$0xff]
    %v168 = vld [vmem:[#allocation5 + $0x50] sm:$0xff]
    %v169 = vld [vmem:[#allocation5 + $0x58] sm:$0xff]
    %v170 = vld [vmem:[#allocation5 + $0x60] sm:$0xff]
    %v171 = vld [vmem:[#allocation5 + $0x68] sm:$0xff]
    %v172 = vld [vmem:[#allocation5 + $0x70] sm:$0xff]
    %v173 = vld [vmem:[#allocation5 + $0x78] sm:$0xff]
    %v174 = vld [vmem:[#allocation5 + $0x80] sm:$0xff]
    %v175 = vld [vmem:[#allocation5 + $0x88] sm:$0xff]
    %v176 = vld [vmem:[#allocation5 + $0x90] sm:$0xff]
    %v177 = vld [vmem:[#allocation5 + $0x98] sm:$0xff]
    %v178 = vld [vmem:[#allocation5 + $0xa0] sm:$0xff]
    %v179 = vld [vmem:[#allocation5 + $0xa8] sm:$0xff]
    %v180 = vld [vmem:[#allocation5 + $0xb0] sm:$0xff]
    %v181 = vld [vmem:[#allocation5 + $0xb8] sm:$0xff]
    %v182 = vld [vmem:[#allocation5 + $0xc0] sm:$0xff]
    %v183 = vld [vmem:[#allocation5 + $0xc8] sm:$0xff]
    %v184 = vld [vmem:[#allocation5 + $0xd0] sm:$0xff]
    %v185 = vld [vmem:[#allocation5 + $0xd8] sm:$0xff]
    %v186 = vld [vmem:[#allocation5 + $0xe0] sm:$0xff]
    %v187 = vld [vmem:[#allocation5 + $0xe8] sm:$0xff]
    %v188 = vld [vmem:[#allocation5 + $0xf0] sm:$0xff]
    %v189 = vld [vmem:[#allocation5 + $0xf8] sm:$0xff]
    %v190 = vld [vmem:[#allocation5 + $0x100] sm:$0xff]
    %v191 = vld [vmem:[#allocation5 + $0x108] sm:$0xff]
    %v192 = vld [vmem:[#allocation5 + $0x110] sm:$0xff]
    %v193 = vld [vmem:[#allocation5 + $0x118] sm:$0xff]
    %v194 = vld [vmem:[#allocation5 + $0x120] sm:$0xff]
    %v195 = vld [vmem:[#allocation5 + $0x128] sm:$0xff]
    %v196 = vld [vmem:[#allocation5 + $0x130] sm:$0xff]
    %v197 = vld [vmem:[#allocation5 + $0x138] sm:$0xff]
    %v198 = vld [vmem:[#allocation5 + $0x140] sm:$0xff]
    %v199 = vld [vmem:[#allocation5 + $0x148] sm:$0xff]
    %v200 = vld [vmem:[#allocation5 + $0x150] sm:$0xff]
    %v201 = vld [vmem:[#allocation5 + $0x158] sm:$0xff]
    %v202 = vld [vmem:[#allocation5 + $0x160] sm:$0xff]
    %v203 = vld [vmem:[#allocation5 + $0x168] sm:$0xff]
    %v204 = vld [vmem:[#allocation5 + $0x170] sm:$0xff]
    %v205 = vld [vmem:[#allocation5 + $0x178] sm:$0xff]
    %v206 = vld [vmem:[#allocation5 + $0x180] sm:$0xff]
    %v207 = vld [vmem:[#allocation5 + $0x188] sm:$0xff]
    %v208 = vld [vmem:[#allocation5 + $0x190] sm:$0xff]
    %v209 = vld [vmem:[#allocation5 + $0x198] sm:$0xff]
    %v210 = vld [vmem:[#allocation5 + $0x1a0] sm:$0xff]
    %v211 = vld [vmem:[#allocation5 + $0x1a8] sm:$0xff]
    %v212 = vld [vmem:[#allocation5 + $0x1b0] sm:$0xff]
    %v213 = vld [vmem:[#allocation5 + $0x1b8] sm:$0xff]
    %v214 = vld [vmem:[#allocation5 + $0x1c0] sm:$0xff]
    %v215 = vld [vmem:[#allocation5 + $0x1c8] sm:$0xff]
    %v216 = vld [vmem:[#allocation5 + $0x1d0] sm:$0xff]
    %v217 = vld [vmem:[#allocation5 + $0x1d8] sm:$0xff]
    %v218 = vld [vmem:[#allocation5 + $0x1e0] sm:$0xff]
    %v219 = vld [vmem:[#allocation5 + $0x1e8] sm:$0xff]
    %v220 = vld [vmem:[#allocation5 + $0x1f0] sm:$0xff]
    %v221 = vld [vmem:[#allocation5 + $0x1f8] sm:$0xff]
    %v222 = vld [vmem:[%s2] sm:$0x3]
    %v224 = vlaneseq
    %v225 = vshrl.u32 %v224, 7
    %v226 = vsub.s32 0, %v225
    %v227 = vrot.slane %v222, %v226
    %v228 = vlaneseq
    %v229 = vshrl.u32 %v228, 7
    %v230 = vsub.s32 1, %v229
    %v231 = vrot.slane %v222, %v230
    %v298 = vunpack.c.l.b16 %v158
    %v299 = vunpack.c.h.b16 %v158
    %v300 = vunpack.c.l.b16 %v159
    %v301 = vunpack.c.h.b16 %v159
    %v302 = vunpack.c.l.b16 %v160
    %v303 = vunpack.c.h.b16 %v160
    %v304 = vunpack.c.l.b16 %v161
    %v305 = vunpack.c.h.b16 %v161
    %v306 = vunpack.c.l.b16 %v162
    %v307 = vunpack.c.h.b16 %v162
    %v308 = vunpack.c.l.b16 %v163
    %v309 = vunpack.c.h.b16 %v163
    %v310 = vunpack.c.l.b16 %v164
    %v311 = vunpack.c.h.b16 %v164
    %v312 = vunpack.c.l.b16 %v165
    %v313 = vunpack.c.h.b16 %v165
    %v314 = vunpack.c.l.b16 %v166
    %v315 = vunpack.c.h.b16 %v166
    %v316 = vunpack.c.l.b16 %v167
    %v317 = vunpack.c.h.b16 %v167
    %v318 = vunpack.c.l.b16 %v168
    %v319 = vunpack.c.h.b16 %v168
    %v320 = vunpack.c.l.b16 %v169
    %v321 = vunpack.c.h.b16 %v169
    %v322 = vunpack.c.l.b16 %v170
    %v323 = vunpack.c.h.b16 %v170
    %v324 = vunpack.c.l.b16 %v171
    %v325 = vunpack.c.h.b16 %v171
    %v326 = vunpack.c.l.b16 %v172
    %v327 = vunpack.c.h.b16 %v172
    %v328 = vunpack.c.l.b16 %v173
    %v329 = vunpack.c.h.b16 %v173
    %v330 = vunpack.c.l.b16 %v174
    %v331 = vunpack.c.h.b16 %v174
    %v332 = vunpack.c.l.b16 %v175
    %v333 = vunpack.c.h.b16 %v175
    %v334 = vunpack.c.l.b16 %v176
    %v335 = vunpack.c.h.b16 %v176
    %v336 = vunpack.c.l.b16 %v177
    %v337 = vunpack.c.h.b16 %v177
    %v338 = vunpack.c.l.b16 %v178
    %v339 = vunpack.c.h.b16 %v178
    %v340 = vunpack.c.l.b16 %v179
    %v341 = vunpack.c.h.b16 %v179
    %v342 = vunpack.c.l.b16 %v180
    %v343 = vunpack.c.h.b16 %v180
    %v344 = vunpack.c.l.b16 %v181
    %v345 = vunpack.c.h.b16 %v181
    %v346 = vunpack.c.l.b16 %v182
    %v347 = vunpack.c.h.b16 %v182
    %v348 = vunpack.c.l.b16 %v183
    %v349 = vunpack.c.h.b16 %v183
    %v350 = vunpack.c.l.b16 %v184
    %v351 = vunpack.c.h.b16 %v184
    %v352 = vunpack.c.l.b16 %v185
    %v353 = vunpack.c.h.b16 %v185
    %v354 = vunpack.c.l.b16 %v186
    %v355 = vunpack.c.h.b16 %v186
    %v356 = vunpack.c.l.b16 %v187
    %v357 = vunpack.c.h.b16 %v187
    %v358 = vunpack.c.l.b16 %v188
    %v359 = vunpack.c.h.b16 %v188
    %v360 = vunpack.c.l.b16 %v189
    %v361 = vunpack.c.h.b16 %v189
    %v362 = vunpack.c.l.b16 %v190
    %v363 = vunpack.c.h.b16 %v190
    %v364 = vunpack.c.l.b16 %v191
    %v365 = vunpack.c.h.b16 %v191
    %v366 = vunpack.c.l.b16 %v192
    %v367 = vunpack.c.h.b16 %v192
    %v368 = vunpack.c.l.b16 %v193
    %v369 = vunpack.c.h.b16 %v193
    %v370 = vunpack.c.l.b16 %v194
    %v371 = vunpack.c.h.b16 %v194
    %v372 = vunpack.c.l.b16 %v195
    %v373 = vunpack.c.h.b16 %v195
    %v374 = vunpack.c.l.b16 %v196
    %v375 = vunpack.c.h.b16 %v196
    %v376 = vunpack.c.l.b16 %v197
    %v377 = vunpack.c.h.b16 %v197
    %v378 = vunpack.c.l.b16 %v198
    %v379 = vunpack.c.h.b16 %v198
    %v380 = vunpack.c.l.b16 %v199
    %v381 = vunpack.c.h.b16 %v199
    %v382 = vunpack.c.l.b16 %v200
    %v383 = vunpack.c.h.b16 %v200
    %v384 = vunpack.c.l.b16 %v201
    %v385 = vunpack.c.h.b16 %v201
    %v386 = vunpack.c.l.b16 %v202
    %v387 = vunpack.c.h.b16 %v202
    %v388 = vunpack.c.l.b16 %v203
    %v389 = vunpack.c.h.b16 %v203
    %v390 = vunpack.c.l.b16 %v204
    %v391 = vunpack.c.h.b16 %v204
    %v392 = vunpack.c.l.b16 %v205
    %v393 = vunpack.c.h.b16 %v205
    %v394 = vunpack.c.l.b16 %v206
    %v395 = vunpack.c.h.b16 %v206
    %v396 = vunpack.c.l.b16 %v207
    %v397 = vunpack.c.h.b16 %v207
    %v398 = vunpack.c.l.b16 %v208
    %v399 = vunpack.c.h.b16 %v208
    %v400 = vunpack.c.l.b16 %v209
    %v401 = vunpack.c.h.b16 %v209
    %v402 = vunpack.c.l.b16 %v210
    %v403 = vunpack.c.h.b16 %v210
    %v404 = vunpack.c.l.b16 %v211
    %v405 = vunpack.c.h.b16 %v211
    %v406 = vunpack.c.l.b16 %v212
    %v407 = vunpack.c.h.b16 %v212
    %v408 = vunpack.c.l.b16 %v213
    %v409 = vunpack.c.h.b16 %v213
    %v410 = vunpack.c.l.b16 %v214
    %v411 = vunpack.c.h.b16 %v214
    %v412 = vunpack.c.l.b16 %v215
    %v413 = vunpack.c.h.b16 %v215
    %v414 = vunpack.c.l.b16 %v216
    %v415 = vunpack.c.h.b16 %v216
    %v416 = vunpack.c.l.b16 %v217
    %v417 = vunpack.c.h.b16 %v217
    %v418 = vunpack.c.l.b16 %v218
    %v419 = vunpack.c.h.b16 %v218
    %v420 = vunpack.c.l.b16 %v219
    %v421 = vunpack.c.h.b16 %v219
    %v422 = vunpack.c.l.b16 %v220
    %v423 = vunpack.c.h.b16 %v220
    %v424 = vunpack.c.l.b16 %v221
    %v425 = vunpack.c.h.b16 %v221
    %v426 = vpack.c.b16 %v300, %v298
    %v427 = vpack.c.b16 %v301, %v299
    %v428 = vpack.c.b16 %v304, %v302
    %v429 = vpack.c.b16 %v305, %v303
    %v430 = vpack.c.b16 %v308, %v306
    %v431 = vpack.c.b16 %v309, %v307
    %v432 = vpack.c.b16 %v312, %v310
    %v433 = vpack.c.b16 %v313, %v311
    %v434 = vpack.c.b16 %v316, %v314
    %v435 = vpack.c.b16 %v317, %v315
    %v436 = vpack.c.b16 %v320, %v318
    %v437 = vpack.c.b16 %v321, %v319
    %v438 = vpack.c.b16 %v324, %v322
    %v439 = vpack.c.b16 %v325, %v323
    %v440 = vpack.c.b16 %v328, %v326
    %v441 = vpack.c.b16 %v329, %v327
    %v442 = vpack.c.b16 %v332, %v330
    %v443 = vpack.c.b16 %v333, %v331
    %v444 = vpack.c.b16 %v336, %v334
    %v445 = vpack.c.b16 %v337, %v335
    %v446 = vpack.c.b16 %v340, %v338
    %v447 = vpack.c.b16 %v341, %v339
    %v448 = vpack.c.b16 %v344, %v342
    %v449 = vpack.c.b16 %v345, %v343
    %v450 = vpack.c.b16 %v348, %v346
    %v451 = vpack.c.b16 %v349, %v347
    %v452 = vpack.c.b16 %v352, %v350
    %v453 = vpack.c.b16 %v353, %v351
    %v454 = vpack.c.b16 %v356, %v354
    %v455 = vpack.c.b16 %v357, %v355
    %v456 = vpack.c.b16 %v360, %v358
    %v457 = vpack.c.b16 %v361, %v359
    %v458 = vpack.c.b16 %v364, %v362
    %v459 = vpack.c.b16 %v365, %v363
    %v460 = vpack.c.b16 %v368, %v366
    %v461 = vpack.c.b16 %v369, %v367
    %v462 = vpack.c.b16 %v372, %v370
    %v463 = vpack.c.b16 %v373, %v371
    %v464 = vpack.c.b16 %v376, %v374
    %v465 = vpack.c.b16 %v377, %v375
    %v466 = vpack.c.b16 %v380, %v378
    %v467 = vpack.c.b16 %v381, %v379
    %v468 = vpack.c.b16 %v384, %v382
    %v469 = vpack.c.b16 %v385, %v383
    %v470 = vpack.c.b16 %v388, %v386
    %v471 = vpack.c.b16 %v389, %v387
    %v472 = vpack.c.b16 %v392, %v390
    %v473 = vpack.c.b16 %v393, %v391
    %v474 = vpack.c.b16 %v396, %v394
    %v475 = vpack.c.b16 %v397, %v395
    %v476 = vpack.c.b16 %v400, %v398
    %v477 = vpack.c.b16 %v401, %v399
    %v478 = vpack.c.b16 %v404, %v402
    %v479 = vpack.c.b16 %v405, %v403
    %v480 = vpack.c.b16 %v408, %v406
    %v481 = vpack.c.b16 %v409, %v407
    %v482 = vpack.c.b16 %v412, %v410
    %v483 = vpack.c.b16 %v413, %v411
    %v484 = vpack.c.b16 %v416, %v414
    %v485 = vpack.c.b16 %v417, %v415
    %v486 = vpack.c.b16 %v420, %v418
    %v487 = vpack.c.b16 %v421, %v419
    %v488 = vpack.c.b16 %v424, %v422
    %v489 = vpack.c.b16 %v425, %v423
    %554 = vmatprep.subr.bf16.mxu0 %v427
    %555 = vmatpush1.bf16.msra.mxu0 %v426
    %556 = vmatprep.subr.bf16.mxu0 %v429
    %557 = vmatpush1.bf16.msra.mxu0 %v428
    %558 = vmatprep.subr.bf16.mxu0 %v431
    %559 = vmatpush1.bf16.msra.mxu0 %v430
    %560 = vmatprep.subr.bf16.mxu0 %v433
    %561 = vmatpush1.bf16.msra.mxu0 %v432
    %562 = vmatprep.subr.bf16.mxu0 %v435
    %563 = vmatpush1.bf16.msra.mxu0 %v434
    %564 = vmatprep.subr.bf16.mxu0 %v437
    %565 = vmatpush1.bf16.msra.mxu0 %v436
    %566 = vmatprep.subr.bf16.mxu0 %v439
    %567 = vmatpush1.bf16.msra.mxu0 %v438
    %568 = vmatprep.subr.bf16.mxu0 %v441
    %569 = vmatpush1.bf16.msra.mxu0 %v440
    %570 = vmatprep.subr.bf16.mxu0 %v443
    %571 = vmatpush1.bf16.msra.mxu0 %v442
    %572 = vmatprep.subr.bf16.mxu0 %v445
    %573 = vmatpush1.bf16.msra.mxu0 %v444
    %574 = vmatprep.subr.bf16.mxu0 %v447
    %575 = vmatpush1.bf16.msra.mxu0 %v446
    %576 = vmatprep.subr.bf16.mxu0 %v449
    %577 = vmatpush1.bf16.msra.mxu0 %v448
    %578 = vmatprep.subr.bf16.mxu0 %v451
    %579 = vmatpush1.bf16.msra.mxu0 %v450
    %580 = vmatprep.subr.bf16.mxu0 %v453
    %581 = vmatpush1.bf16.msra.mxu0 %v452
    %582 = vmatprep.subr.bf16.mxu0 %v455
    %583 = vmatpush1.bf16.msra.mxu0 %v454
    %584 = vmatprep.subr.bf16.mxu0 %v457
    %585 = vmatpush1.bf16.msra.mxu0 %v456
    %586 = vmatprep.mubr.bf16.mxu0 %v127
    %587 = vmatmul.mubr.bf16.gmra.mrb[0].mxu0 %v126
    %v588 = vpop.f32.mrb[0].mxu0
    %v589 = vadd.f32 %v227, %v588
    %v590 = vpop.f32.mrb[0].mxu0
    %v591 = vadd.f32 %v231, %v590
    %v592 = vpop.f32.mrb[0].mxu0
    %v593 = vadd.f32 %v227, %v592
    %v594 = vpop.f32.mrb[0].mxu0
    %v595 = vadd.f32 %v231, %v594
    %596 = vmatprep.mubr.bf16.mxu0 %v131
    %597 = vmatmul.mubr.bf16.gmra.mrb[0].mxu0 %v130
    %v598 = vpop.f32.mrb[0].mxu0
    %v599 = vadd.f32 %v227, %v598
    %v600 = vpop.f32.mrb[0].mxu0
    %v601 = vadd.f32 %v231, %v600
    %v602 = vpop.f32.mrb[0].mxu0
    %v603 = vadd.f32 %v227, %v602
    %v604 = vpop.f32.mrb[0].mxu0
    %v605 = vadd.f32 %v231, %v604
    %606 = vmatprep.mubr.bf16.mxu0 %v135
    %607 = vmatmul.mubr.bf16.gmra.mrb[0].mxu0 %v134
    %v608 = vpop.f32.mrb[0].mxu0
    %v609 = vadd.f32 %v227, %v608
    %v610 = vpop.f32.mrb[0].mxu0
    %v611 = vadd.f32 %v231, %v610
    %v612 = vpop.f32.mrb[0].mxu0
    %v613 = vadd.f32 %v227, %v612
    %v614 = vpop.f32.mrb[0].mxu0
    %v615 = vadd.f32 %v231, %v614
    %616 = vmatprep.mubr.bf16.mxu0 %v139
    %617 = vmatmul.mubr.bf16.gmra.mrb[0].mxu0 %v138
    %v618 = vpop.f32.mrb[0].mxu0
    %v619 = vadd.f32 %v227, %v618
    %v620 = vpop.f32.mrb[0].mxu0
    %v621 = vadd.f32 %v231, %v620
    %v622 = vpop.f32.mrb[0].mxu0
    %v623 = vadd.f32 %v227, %v622
    %v624 = vpop.f32.mrb[0].mxu0
    %v625 = vadd.f32 %v231, %v624
    %626 = vmatprep.mubr.bf16.mxu0 %v143
    %627 = vmatmul.mubr.bf16.gmra.mrb[0].mxu0 %v142
    %v628 = vpop.f32.mrb[0].mxu0
    %v629 = vadd.f32 %v227, %v628
    %v630 = vpop.f32.mrb[0].mxu0
    %v631 = vadd.f32 %v231, %v630
    %v632 = vpop.f32.mrb[0].mxu0
    %v633 = vadd.f32 %v227, %v632
    %v634 = vpop.f32.mrb[0].mxu0
    %v635 = vadd.f32 %v231, %v634
    %636 = vmatprep.mubr.bf16.mxu0 %v147
    %637 = vmatmul.mubr.bf16.gmra.mrb[0].mxu0 %v146
    %v638 = vpop.f32.mrb[0].mxu0
    %v639 = vadd.f32 %v227, %v638
    %v640 = vpop.f32.mrb[0].mxu0
    %v641 = vadd.f32 %v231, %v640
    %v642 = vpop.f32.mrb[0].mxu0
    %v643 = vadd.f32 %v227, %v642
    %v644 = vpop.f32.mrb[0].mxu0
    %v645 = vadd.f32 %v231, %v644
    %646 = vmatprep.mubr.bf16.mxu0 %v151
    %647 = vmatmul.mubr.bf16.gmra.mrb[0].mxu0 %v150
    %v648 = vpop.f32.mrb[0].mxu0
    %v649 = vadd.f32 %v227, %v648
    %v650 = vpop.f32.mrb[0].mxu0
    %v651 = vadd.f32 %v231, %v650
    %v652 = vpop.f32.mrb[0].mxu0
    %v653 = vadd.f32 %v227, %v652
    %v654 = vpop.f32.mrb[0].mxu0
    %v655 = vadd.f32 %v231, %v654
    %656 = vmatprep.mubr.bf16.mxu0 %v155
    %657 = vmatmul.mubr.bf16.gmra.mrb[0].mxu0 %v154
    %v658 = vpop.f32.mrb[0].mxu0
    %v659 = vadd.f32 %v227, %v658
    %v660 = vpop.f32.mrb[0].mxu0
    %v661 = vadd.f32 %v231, %v660
    %v662 = vpop.f32.mrb[0].mxu0
    %v663 = vadd.f32 %v227, %v662
    %v664 = vpop.f32.mrb[0].mxu0
    %v665 = vadd.f32 %v231, %v664
    %666 = vdwg.mxu0
    %667 = vmatprep.subr.bf16.mxu0 %v459
    %668 = vmatpush1.bf16.msra.mxu0 %v458
    %669 = vmatprep.subr.bf16.mxu0 %v461
    %670 = vmatpush1.bf16.msra.mxu0 %v460
    %671 = vmatprep.subr.bf16.mxu0 %v463
    %672 = vmatpush1.bf16.msra.mxu0 %v462
    %673 = vmatprep.subr.bf16.mxu0 %v465
    %674 = vmatpush1.bf16.msra.mxu0 %v464
    %675 = vmatprep.subr.bf16.mxu0 %v467
    %676 = vmatpush1.bf16.msra.mxu0 %v466
    %677 = vmatprep.subr.bf16.mxu0 %v469
    %678 = vmatpush1.bf16.msra.mxu0 %v468
    %679 = vmatprep.subr.bf16.mxu0 %v471
    %680 = vmatpush1.bf16.msra.mxu0 %v470
    %681 = vmatprep.subr.bf16.mxu0 %v473
    %682 = vmatpush1.bf16.msra.mxu0 %v472
    %683 = vmatprep.subr.bf16.mxu0 %v475
    %684 = vmatpush1.bf16.msra.mxu0 %v474
    %685 = vmatprep.subr.bf16.mxu0 %v477
    %686 = vmatpush1.bf16.msra.mxu0 %v476
    %687 = vmatprep.subr.bf16.mxu0 %v479
    %688 = vmatpush1.bf16.msra.mxu0 %v478
    %689 = vmatprep.subr.bf16.mxu0 %v481
    %690 = vmatpush1.bf16.msra.mxu0 %v480
    %691 = vmatprep.subr.bf16.mxu0 %v483
    %692 = vmatpush1.bf16.msra.mxu0 %v482
    %693 = vmatprep.subr.bf16.mxu0 %v485
    %694 = vmatpush1.bf16.msra.mxu0 %v484
    %695 = vmatprep.subr.bf16.mxu0 %v487
    %696 = vmatpush1.bf16.msra.mxu0 %v486
    %697 = vmatprep.subr.bf16.mxu0 %v489
    %698 = vmatpush1.bf16.msra.mxu0 %v488
    %699 = vmatprep.mubr.bf16.mxu0 %v129
    %700 = vmatmul.mubr.bf16.gmra.mrb[0].mxu0 %v128
    %v701 = vpop.f32.mrb[0].mxu0
    %v702 = vadd.f32 %v589, %v701
    %v703 = vpop.f32.mrb[0].mxu0
    %v704 = vadd.f32 %v591, %v703
    %v705 = vpop.f32.mrb[0].mxu0
    %v706 = vadd.f32 %v593, %v705
    %v707 = vpop.f32.mrb[0].mxu0
    %v708 = vadd.f32 %v595, %v707
    %709 = vmatprep.mubr.bf16.mxu0 %v133
    %710 = vmatmul.mubr.bf16.gmra.mrb[0].mxu0 %v132
    %v711 = vpop.f32.mrb[0].mxu0
    %v712 = vadd.f32 %v599, %v711
    %v713 = vpop.f32.mrb[0].mxu0
    %v714 = vadd.f32 %v601, %v713
    %v715 = vpop.f32.mrb[0].mxu0
    %v716 = vadd.f32 %v603, %v715
    %v717 = vpop.f32.mrb[0].mxu0
    %v718 = vadd.f32 %v605, %v717
    %719 = vmatprep.mubr.bf16.mxu0 %v137
    %720 = vmatmul.mubr.bf16.gmra.mrb[0].mxu0 %v136
    %v721 = vpop.f32.mrb[0].mxu0
    %v722 = vadd.f32 %v609, %v721
    %v723 = vpop.f32.mrb[0].mxu0
    %v724 = vadd.f32 %v611, %v723
    %v725 = vpop.f32.mrb[0].mxu0
    %v726 = vadd.f32 %v613, %v725
    %v727 = vpop.f32.mrb[0].mxu0
    %v728 = vadd.f32 %v615, %v727
    %729 = vmatprep.mubr.bf16.mxu0 %v141
    %730 = vmatmul.mubr.bf16.gmra.mrb[0].mxu0 %v140
    %v731 = vpop.f32.mrb[0].mxu0
    %v732 = vadd.f32 %v619, %v731
    %v733 = vpop.f32.mrb[0].mxu0
    %v734 = vadd.f32 %v621, %v733
    %v735 = vpop.f32.mrb[0].mxu0
    %v736 = vadd.f32 %v623, %v735
    %v737 = vpop.f32.mrb[0].mxu0
    %v738 = vadd.f32 %v625, %v737
    %739 = vmatprep.mubr.bf16.mxu0 %v145
    %740 = vmatmul.mubr.bf16.gmra.mrb[0].mxu0 %v144
    %v741 = vpop.f32.mrb[0].mxu0
    %v742 = vadd.f32 %v629, %v741
    %v743 = vpop.f32.mrb[0].mxu0
    %v744 = vadd.f32 %v631, %v743
    %v745 = vpop.f32.mrb[0].mxu0
    %v746 = vadd.f32 %v633, %v745
    %v747 = vpop.f32.mrb[0].mxu0
    %v748 = vadd.f32 %v635, %v747
    %749 = vmatprep.mubr.bf16.mxu0 %v149
    %750 = vmatmul.mubr.bf16.gmra.mrb[0].mxu0 %v148
    %v751 = vpop.f32.mrb[0].mxu0
    %v752 = vadd.f32 %v639, %v751
    %v753 = vpop.f32.mrb[0].mxu0
    %v754 = vadd.f32 %v641, %v753
    %v755 = vpop.f32.mrb[0].mxu0
    %v756 = vadd.f32 %v643, %v755
    %v757 = vpop.f32.mrb[0].mxu0
    %v758 = vadd.f32 %v645, %v757
    %759 = vmatprep.mubr.bf16.mxu0 %v153
    %760 = vmatmul.mubr.bf16.gmra.mrb[0].mxu0 %v152
    %v761 = vpop.f32.mrb[0].mxu0
    %v762 = vadd.f32 %v649, %v761
    %v763 = vpop.f32.mrb[0].mxu0
    %v764 = vadd.f32 %v651, %v763
    %v765 = vpop.f32.mrb[0].mxu0
    %v766 = vadd.f32 %v653, %v765
    %v767 = vpop.f32.mrb[0].mxu0
    %v768 = vadd.f32 %v655, %v767
    %769 = vmatprep.mubr.bf16.mxu0 %v157
    %770 = vmatmul.mubr.bf16.gmra.mrb[0].mxu0 %v156
    %v771 = vpop.f32.mrb[0].mxu0
    %v772 = vadd.f32 %v659, %v771
    %v773 = vpop.f32.mrb[0].mxu0
    %v774 = vadd.f32 %v661, %v773
    %v775 = vpop.f32.mrb[0].mxu0
    %v776 = vadd.f32 %v663, %v775
    %v777 = vpop.f32.mrb[0].mxu0
    %v778 = vadd.f32 %v665, %v777
    %779 = vdwg.mxu0
    %v780 = vmax.f32 %v702, 0.0
    %v781 = vmax.f32 %v704, 0.0
    %v782 = vmax.f32 %v706, 0.0
    %v783 = vmax.f32 %v708, 0.0
    %v784 = vmax.f32 %v712, 0.0
    %v785 = vmax.f32 %v714, 0.0
    %v786 = vmax.f32 %v716, 0.0
    %v787 = vmax.f32 %v718, 0.0
    %v788 = vmax.f32 %v722, 0.0
    %v789 = vmax.f32 %v724, 0.0
    %v790 = vmax.f32 %v726, 0.0
    %v791 = vmax.f32 %v728, 0.0
    %v792 = vmax.f32 %v732, 0.0
    %v793 = vmax.f32 %v734, 0.0
    %v794 = vmax.f32 %v736, 0.0
    %v795 = vmax.f32 %v738, 0.0
    %v796 = vmax.f32 %v742, 0.0
    %v797 = vmax.f32 %v744, 0.0
    %v798 = vmax.f32 %v746, 0.0
    %v799 = vmax.f32 %v748, 0.0
    %v800 = vmax.f32 %v752, 0.0
    %v801 = vmax.f32 %v754, 0.0
    %v802 = vmax.f32 %v756, 0.0
    %v803 = vmax.f32 %v758, 0.0
    %v804 = vmax.f32 %v762, 0.0
    %v805 = vmax.f32 %v764, 0.0
    %v806 = vmax.f32 %v766, 0.0
    %v807 = vmax.f32 %v768, 0.0
    %v808 = vmax.f32 %v772, 0.0
    %v809 = vmax.f32 %v774, 0.0
    %v810 = vmax.f32 %v776, 0.0
    %v811 = vmax.f32 %v778, 0.0
    %v812 = vpack.c.bf16 %v782, %v780
    %v813 = vpack.c.bf16 %v783, %v781
    %v814 = vpack.c.bf16 %v786, %v784
    %v815 = vpack.c.bf16 %v787, %v785
    %v816 = vpack.c.bf16 %v790, %v788
    %v817 = vpack.c.bf16 %v791, %v789
    %v818 = vpack.c.bf16 %v794, %v792
    %v819 = vpack.c.bf16 %v795, %v793
    %v820 = vpack.c.bf16 %v798, %v796
    %v821 = vpack.c.bf16 %v799, %v797
    %v822 = vpack.c.bf16 %v802, %v800
    %v823 = vpack.c.bf16 %v803, %v801
    %v824 = vpack.c.bf16 %v806, %v804
    %v825 = vpack.c.bf16 %v807, %v805
    %v826 = vpack.c.bf16 %v810, %v808
    %v827 = vpack.c.bf16 %v811, %v809
    %v828 = vld [vmem:[#allocation7] sm:$0xff]
    %v829 = vld [vmem:[#allocation7 + $0x8] sm:$0xff]
    %v830 = vld [vmem:[#allocation7 + $0x10] sm:$0xff]
    %v831 = vld [vmem:[#allocation7 + $0x18] sm:$0xff]
    %v832 = vld [vmem:[#allocation7 + $0x20] sm:$0xff]
    %v833 = vld [vmem:[#allocation7 + $0x28] sm:$0xff]
    %v834 = vld [vmem:[#allocation7 + $0x30] sm:$0xff]
    %v835 = vld [vmem:[#allocation7 + $0x38] sm:$0xff]
    %v836 = vld [vmem:[#allocation7 + $0x40] sm:$0xff]
    %v837 = vld [vmem:[#allocation7 + $0x48] sm:$0xff]
    %v838 = vld [vmem:[#allocation7 + $0x50] sm:$0xff]
    %v839 = vld [vmem:[#allocation7 + $0x58] sm:$0xff]
    %v840 = vld [vmem:[#allocation7 + $0x60] sm:$0xff]
    %v841 = vld [vmem:[#allocation7 + $0x68] sm:$0xff]
    %v842 = vld [vmem:[#allocation7 + $0x70] sm:$0xff]
    %v843 = vld [vmem:[#allocation7 + $0x78] sm:$0xff]
    %v844 = vld [vmem:[#allocation7 + $0x80] sm:$0xff]
    %v845 = vld [vmem:[#allocation7 + $0x88] sm:$0xff]
    %v846 = vld [vmem:[#allocation7 + $0x90] sm:$0xff]
    %v847 = vld [vmem:[#allocation7 + $0x98] sm:$0xff]
    %v848 = vld [vmem:[#allocation7 + $0xa0] sm:$0xff]
    %v849 = vld [vmem:[#allocation7 + $0xa8] sm:$0xff]
    %v850 = vld [vmem:[#allocation7 + $0xb0] sm:$0xff]
    %v851 = vld [vmem:[#allocation7 + $0xb8] sm:$0xff]
    %v852 = vld [vmem:[#allocation7 + $0xc0] sm:$0xff]
    %v853 = vld [vmem:[#allocation7 + $0xc8] sm:$0xff]
    %v854 = vld [vmem:[#allocation7 + $0xd0] sm:$0xff]
    %v855 = vld [vmem:[#allocation7 + $0xd8] sm:$0xff]
    %v856 = vld [vmem:[#allocation7 + $0xe0] sm:$0xff]
    %v857 = vld [vmem:[#allocation7 + $0xe8] sm:$0xff]
    %v858 = vld [vmem:[#allocation7 + $0xf0] sm:$0xff]
    %v859 = vld [vmem:[#allocation7 + $0xf8] sm:$0xff]
    %v860 = vld [vmem:[#allocation7 + $0x100] sm:$0xff]
    %v861 = vld [vmem:[#allocation7 + $0x108] sm:$0xff]
    %v862 = vld [vmem:[#allocation7 + $0x110] sm:$0xff]
    %v863 = vld [vmem:[#allocation7 + $0x118] sm:$0xff]
    %v864 = vld [vmem:[#allocation7 + $0x120] sm:$0xff]
    %v865 = vld [vmem:[#allocation7 + $0x128] sm:$0xff]
    %v866 = vld [vmem:[#allocation7 + $0x130] sm:$0xff]
    %v867 = vld [vmem:[#allocation7 + $0x138] sm:$0xff]
    %v868 = vld [vmem:[#allocation7 + $0x140] sm:$0xff]
    %v869 = vld [vmem:[#allocation7 + $0x148] sm:$0xff]
    %v870 = vld [vmem:[#allocation7 + $0x150] sm:$0xff]
    %v871 = vld [vmem:[#allocation7 + $0x158] sm:$0xff]
    %v872 = vld [vmem:[#allocation7 + $0x160] sm:$0xff]
    %v873 = vld [vmem:[#allocation7 + $0x168] sm:$0xff]
    %v874 = vld [vmem:[#allocation7 + $0x170] sm:$0xff]
    %v875 = vld [vmem:[#allocation7 + $0x178] sm:$0xff]
    %v876 = vld [vmem:[#allocation7 + $0x180] sm:$0xff]
    %v877 = vld [vmem:[#allocation7 + $0x188] sm:$0xff]
    %v878 = vld [vmem:[#allocation7 + $0x190] sm:$0xff]
    %v879 = vld [vmem:[#allocation7 + $0x198] sm:$0xff]
    %v880 = vld [vmem:[#allocation7 + $0x1a0] sm:$0xff]
    %v881 = vld [vmem:[#allocation7 + $0x1a8] sm:$0xff]
    %v882 = vld [vmem:[#allocation7 + $0x1b0] sm:$0xff]
    %v883 = vld [vmem:[#allocation7 + $0x1b8] sm:$0xff]
    %v884 = vld [vmem:[#allocation7 + $0x1c0] sm:$0xff]
    %v885 = vld [vmem:[#allocation7 + $0x1c8] sm:$0xff]
    %v886 = vld [vmem:[#allocation7 + $0x1d0] sm:$0xff]
    %v887 = vld [vmem:[#allocation7 + $0x1d8] sm:$0xff]
    %v888 = vld [vmem:[#allocation7 + $0x1e0] sm:$0xff]
    %v889 = vld [vmem:[#allocation7 + $0x1e8] sm:$0xff]
    %v890 = vld [vmem:[#allocation7 + $0x1f0] sm:$0xff]
    %v891 = vld [vmem:[#allocation7 + $0x1f8] sm:$0xff]
    %v892 = vld [vmem:[%s4] sm:$0xf]
    %v894 = vlaneseq
    %v895 = vshrl.u32 %v894, 7
    %v896 = vsub.s32 0, %v895
    %v897 = vrot.slane %v892, %v896
    %v898 = vlaneseq
    %v899 = vshrl.u32 %v898, 7
    %v900 = vsub.s32 1, %v899
    %v901 = vrot.slane %v892, %v900
    %v902 = vlaneseq
    %v903 = vshrl.u32 %v902, 7
    %v904 = vsub.s32 2, %v903
    %v905 = vrot.slane %v892, %v904
    %v906 = vlaneseq
    %v907 = vshrl.u32 %v906, 7
    %v908 = vsub.s32 3, %v907
    %v909 = vrot.slane %v892, %v908
    %v978 = vunpack.c.l.b16 %v828
    %v979 = vunpack.c.h.b16 %v828
    %v980 = vunpack.c.l.b16 %v829
    %v981 = vunpack.c.h.b16 %v829
    %v982 = vunpack.c.l.b16 %v830
    %v983 = vunpack.c.h.b16 %v830
    %v984 = vunpack.c.l.b16 %v831
    %v985 = vunpack.c.h.b16 %v831
    %v986 = vunpack.c.l.b16 %v832
    %v987 = vunpack.c.h.b16 %v832
    %v988 = vunpack.c.l.b16 %v833
    %v989 = vunpack.c.h.b16 %v833
    %v990 = vunpack.c.l.b16 %v834
    %v991 = vunpack.c.h.b16 %v834
    %v992 = vunpack.c.l.b16 %v835
    %v993 = vunpack.c.h.b16 %v835
    %v994 = vunpack.c.l.b16 %v836
    %v995 = vunpack.c.h.b16 %v836
    %v996 = vunpack.c.l.b16 %v837
    %v997 = vunpack.c.h.b16 %v837
    %v998 = vunpack.c.l.b16 %v838
    %v999 = vunpack.c.h.b16 %v838
    %v1000 = vunpack.c.l.b16 %v839
    %v1001 = vunpack.c.h.b16 %v839
    %v1002 = vunpack.c.l.b16 %v840
    %v1003 = vunpack.c.h.b16 %v840
    %v1004 = vunpack.c.l.b16 %v841
    %v1005 = vunpack.c.h.b16 %v841
    %v1006 = vunpack.c.l.b16 %v842
    %v1007 = vunpack.c.h.b16 %v842
    %v1008 = vunpack.c.l.b16 %v843
    %v1009 = vunpack.c.h.b16 %v843
    %v1010 = vunpack.c.l.b16 %v844
    %v1011 = vunpack.c.h.b16 %v844
    %v1012 = vunpack.c.l.b16 %v845
    %v1013 = vunpack.c.h.b16 %v845
    %v1014 = vunpack.c.l.b16 %v846
    %v1015 = vunpack.c.h.b16 %v846
    %v1016 = vunpack.c.l.b16 %v847
    %v1017 = vunpack.c.h.b16 %v847
    %v1018 = vunpack.c.l.b16 %v848
    %v1019 = vunpack.c.h.b16 %v848
    %v1020 = vunpack.c.l.b16 %v849
    %v1021 = vunpack.c.h.b16 %v849
    %v1022 = vunpack.c.l.b16 %v850
    %v1023 = vunpack.c.h.b16 %v850
    %v1024 = vunpack.c.l.b16 %v851
    %v1025 = vunpack.c.h.b16 %v851
    %v1026 = vunpack.c.l.b16 %v852
    %v1027 = vunpack.c.h.b16 %v852
    %v1028 = vunpack.c.l.b16 %v853
    %v1029 = vunpack.c.h.b16 %v853
    %v1030 = vunpack.c.l.b16 %v854
    %v1031 = vunpack.c.h.b16 %v854
    %v1032 = vunpack.c.l.b16 %v855
    %v1033 = vunpack.c.h.b16 %v855
    %v1034 = vunpack.c.l.b16 %v856
    %v1035 = vunpack.c.h.b16 %v856
    %v1036 = vunpack.c.l.b16 %v857
    %v1037 = vunpack.c.h.b16 %v857
    %v1038 = vunpack.c.l.b16 %v858
    %v1039 = vunpack.c.h.b16 %v858
    %v1040 = vunpack.c.l.b16 %v859
    %v1041 = vunpack.c.h.b16 %v859
    %v1042 = vunpack.c.l.b16 %v860
    %v1043 = vunpack.c.h.b16 %v860
    %v1044 = vunpack.c.l.b16 %v861
    %v1045 = vunpack.c.h.b16 %v861
    %v1046 = vunpack.c.l.b16 %v862
    %v1047 = vunpack.c.h.b16 %v862
    %v1048 = vunpack.c.l.b16 %v863
    %v1049 = vunpack.c.h.b16 %v863
    %v1050 = vunpack.c.l.b16 %v864
    %v1051 = vunpack.c.h.b16 %v864
    %v1052 = vunpack.c.l.b16 %v865
    %v1053 = vunpack.c.h.b16 %v865
    %v1054 = vunpack.c.l.b16 %v866
    %v1055 = vunpack.c.h.b16 %v866
    %v1056 = vunpack.c.l.b16 %v867
    %v1057 = vunpack.c.h.b16 %v867
    %v1058 = vunpack.c.l.b16 %v868
    %v1059 = vunpack.c.h.b16 %v868
    %v1060 = vunpack.c.l.b16 %v869
    %v1061 = vunpack.c.h.b16 %v869
    %v1062 = vunpack.c.l.b16 %v870
    %v1063 = vunpack.c.h.b16 %v870
    %v1064 = vunpack.c.l.b16 %v871
    %v1065 = vunpack.c.h.b16 %v871
    %v1066 = vunpack.c.l.b16 %v872
    %v1067 = vunpack.c.h.b16 %v872
    %v1068 = vunpack.c.l.b16 %v873
    %v1069 = vunpack.c.h.b16 %v873
    %v1070 = vunpack.c.l.b16 %v874
    %v1071 = vunpack.c.h.b16 %v874
    %v1072 = vunpack.c.l.b16 %v875
    %v1073 = vunpack.c.h.b16 %v875
    %v1074 = vunpack.c.l.b16 %v876
    %v1075 = vunpack.c.h.b16 %v876
    %v1076 = vunpack.c.l.b16 %v877
    %v1077 = vunpack.c.h.b16 %v877
    %v1078 = vunpack.c.l.b16 %v878
    %v1079 = vunpack.c.h.b16 %v878
    %v1080 = vunpack.c.l.b16 %v879
    %v1081 = vunpack.c.h.b16 %v879
    %v1082 = vunpack.c.l.b16 %v880
    %v1083 = vunpack.c.h.b16 %v880
    %v1084 = vunpack.c.l.b16 %v881
    %v1085 = vunpack.c.h.b16 %v881
    %v1086 = vunpack.c.l.b16 %v882
    %v1087 = vunpack.c.h.b16 %v882
    %v1088 = vunpack.c.l.b16 %v883
    %v1089 = vunpack.c.h.b16 %v883
    %v1090 = vunpack.c.l.b16 %v884
    %v1091 = vunpack.c.h.b16 %v884
    %v1092 = vunpack.c.l.b16 %v885
    %v1093 = vunpack.c.h.b16 %v885
    %v1094 = vunpack.c.l.b16 %v886
    %v1095 = vunpack.c.h.b16 %v886
    %v1096 = vunpack.c.l.b16 %v887
    %v1097 = vunpack.c.h.b16 %v887
    %v1098 = vunpack.c.l.b16 %v888
    %v1099 = vunpack.c.h.b16 %v888
    %v1100 = vunpack.c.l.b16 %v889
    %v1101 = vunpack.c.h.b16 %v889
    %v1102 = vunpack.c.l.b16 %v890
    %v1103 = vunpack.c.h.b16 %v890
    %v1104 = vunpack.c.l.b16 %v891
    %v1105 = vunpack.c.h.b16 %v891
    %v1106 = vpack.c.b16 %v982, %v978
    %v1107 = vpack.c.b16 %v983, %v979
    %v1108 = vpack.c.b16 %v984, %v980
    %v1109 = vpack.c.b16 %v985, %v981
    %v1110 = vpack.c.b16 %v990, %v986
    %v1111 = vpack.c.b16 %v991, %v987
    %v1112 = vpack.c.b16 %v992, %v988
    %v1113 = vpack.c.b16 %v993, %v989
    %v1114 = vpack.c.b16 %v998, %v994
    %v1115 = vpack.c.b16 %v999, %v995
    %v1116 = vpack.c.b16 %v1000, %v996
    %v1117 = vpack.c.b16 %v1001, %v997
    %v1118 = vpack.c.b16 %v1006, %v1002
    %v1119 = vpack.c.b16 %v1007, %v1003
    %v1120 = vpack.c.b16 %v1008, %v1004
    %v1121 = vpack.c.b16 %v1009, %v1005
    %v1122 = vpack.c.b16 %v1014, %v1010
    %v1123 = vpack.c.b16 %v1015, %v1011
    %v1124 = vpack.c.b16 %v1016, %v1012
    %v1125 = vpack.c.b16 %v1017, %v1013
    %v1126 = vpack.c.b16 %v1022, %v1018
    %v1127 = vpack.c.b16 %v1023, %v1019
    %v1128 = vpack.c.b16 %v1024, %v1020
    %v1129 = vpack.c.b16 %v1025, %v1021
    %v1130 = vpack.c.b16 %v1030, %v1026
    %v1131 = vpack.c.b16 %v1031, %v1027
    %v1132 = vpack.c.b16 %v1032, %v1028
    %v1133 = vpack.c.b16 %v1033, %v1029
    %v1134 = vpack.c.b16 %v1038, %v1034
    %v1135 = vpack.c.b16 %v1039, %v1035
    %v1136 = vpack.c.b16 %v1040, %v1036
    %v1137 = vpack.c.b16 %v1041, %v1037
    %v1138 = vpack.c.b16 %v1046, %v1042
    %v1139 = vpack.c.b16 %v1047, %v1043
    %v1140 = vpack.c.b16 %v1048, %v1044
    %v1141 = vpack.c.b16 %v1049, %v1045
    %v1142 = vpack.c.b16 %v1054, %v1050
    %v1143 = vpack.c.b16 %v1055, %v1051
    %v1144 = vpack.c.b16 %v1056, %v1052
    %v1145 = vpack.c.b16 %v1057, %v1053
    %v1146 = vpack.c.b16 %v1062, %v1058
    %v1147 = vpack.c.b16 %v1063, %v1059
    %v1148 = vpack.c.b16 %v1064, %v1060
    %v1149 = vpack.c.b16 %v1065, %v1061
    %v1150 = vpack.c.b16 %v1070, %v1066
    %v1151 = vpack.c.b16 %v1071, %v1067
    %v1152 = vpack.c.b16 %v1072, %v1068
    %v1153 = vpack.c.b16 %v1073, %v1069
    %v1154 = vpack.c.b16 %v1078, %v1074
    %v1155 = vpack.c.b16 %v1079, %v1075
    %v1156 = vpack.c.b16 %v1080, %v1076
    %v1157 = vpack.c.b16 %v1081, %v1077
    %v1158 = vpack.c.b16 %v1086, %v1082
    %v1159 = vpack.c.b16 %v1087, %v1083
    %v1160 = vpack.c.b16 %v1088, %v1084
    %v1161 = vpack.c.b16 %v1089, %v1085
    %v1162 = vpack.c.b16 %v1094, %v1090
    %v1163 = vpack.c.b16 %v1095, %v1091
    %v1164 = vpack.c.b16 %v1096, %v1092
    %v1165 = vpack.c.b16 %v1097, %v1093
    %v1166 = vpack.c.b16 %v1102, %v1098
    %v1167 = vpack.c.b16 %v1103, %v1099
    %v1168 = vpack.c.b16 %v1104, %v1100
    %v1169 = vpack.c.b16 %v1105, %v1101
    %1234 = vmatprep.subr.bf16.mxu0 %v1107
    %1235 = vmatpush1.bf16.msra.mxu0 %v1106
    %1236 = vmatprep.subr.bf16.mxu0 %v1111
    %1237 = vmatpush1.bf16.msra.mxu0 %v1110
    %1238 = vmatprep.subr.bf16.mxu0 %v1115
    %1239 = vmatpush1.bf16.msra.mxu0 %v1114
    %1240 = vmatprep.subr.bf16.mxu0 %v1119
    %1241 = vmatpush1.bf16.msra.mxu0 %v1118
    %1242 = vmatprep.subr.bf16.mxu0 %v1123
    %1243 = vmatpush1.bf16.msra.mxu0 %v1122
    %1244 = vmatprep.subr.bf16.mxu0 %v1127
    %1245 = vmatpush1.bf16.msra.mxu0 %v1126
    %1246 = vmatprep.subr.bf16.mxu0 %v1131
    %1247 = vmatpush1.bf16.msra.mxu0 %v1130
    %1248 = vmatprep.subr.bf16.mxu0 %v1135
    %1249 = vmatpush1.bf16.msra.mxu0 %v1134
    %1250 = vmatprep.subr.bf16.mxu0 %v1139
    %1251 = vmatpush1.bf16.msra.mxu0 %v1138
    %1252 = vmatprep.subr.bf16.mxu0 %v1143
    %1253 = vmatpush1.bf16.msra.mxu0 %v1142
    %1254 = vmatprep.subr.bf16.mxu0 %v1147
    %1255 = vmatpush1.bf16.msra.mxu0 %v1146
    %1256 = vmatprep.subr.bf16.mxu0 %v1151
    %1257 = vmatpush1.bf16.msra.mxu0 %v1150
    %1258 = vmatprep.subr.bf16.mxu0 %v1155
    %1259 = vmatpush1.bf16.msra.mxu0 %v1154
    %1260 = vmatprep.subr.bf16.mxu0 %v1159
    %1261 = vmatpush1.bf16.msra.mxu0 %v1158
    %1262 = vmatprep.subr.bf16.mxu0 %v1163
    %1263 = vmatpush1.bf16.msra.mxu0 %v1162
    %1264 = vmatprep.subr.bf16.mxu0 %v1167
    %1265 = vmatpush1.bf16.msra.mxu0 %v1166
    %1266 = vmatprep.mubr.bf16.mxu0 %v813
    %1267 = vmatmul.mubr.bf16.gmra.mrb[0].mxu0 %v812
    %v1268 = vpop.f32.mrb[0].mxu0
    %v1269 = vadd.f32 %v897, %v1268
    %v1270 = vpop.f32.mrb[0].mxu0
    %v1271 = vadd.f32 %v901, %v1270
    %v1272 = vpop.f32.mrb[0].mxu0
    %v1273 = vadd.f32 %v897, %v1272
    %v1274 = vpop.f32.mrb[0].mxu0
    %v1275 = vadd.f32 %v901, %v1274
    %1276 = vmatprep.mubr.bf16.mxu0 %v815
    %1277 = vmatmul.mubr.bf16.gmra.mrb[0].mxu0 %v814
    %v1278 = vpop.f32.mrb[0].mxu0
    %v1279 = vadd.f32 %v897, %v1278
    %v1280 = vpop.f32.mrb[0].mxu0
    %v1281 = vadd.f32 %v901, %v1280
    %v1282 = vpop.f32.mrb[0].mxu0
    %v1283 = vadd.f32 %v897, %v1282
    %v1284 = vpop.f32.mrb[0].mxu0
    %v1285 = vadd.f32 %v901, %v1284
    %1286 = vmatprep.mubr.bf16.mxu0 %v817
    %1287 = vmatmul.mubr.bf16.gmra.mrb[0].mxu0 %v816
    %v1288 = vpop.f32.mrb[0].mxu0
    %v1289 = vadd.f32 %v897, %v1288
    %v1290 = vpop.f32.mrb[0].mxu0
    %v1291 = vadd.f32 %v901, %v1290
    %v1292 = vpop.f32.mrb[0].mxu0
    %v1293 = vadd.f32 %v897, %v1292
    %v1294 = vpop.f32.mrb[0].mxu0
    %v1295 = vadd.f32 %v901, %v1294
    %1296 = vmatprep.mubr.bf16.mxu0 %v819
    %1297 = vmatmul.mubr.bf16.gmra.mrb[0].mxu0 %v818
    %v1298 = vpop.f32.mrb[0].mxu0
    %v1299 = vadd.f32 %v897, %v1298
    %v1300 = vpop.f32.mrb[0].mxu0
    %v1301 = vadd.f32 %v901, %v1300
    %v1302 = vpop.f32.mrb[0].mxu0
    %v1303 = vadd.f32 %v897, %v1302
    %v1304 = vpop.f32.mrb[0].mxu0
    %v1305 = vadd.f32 %v901, %v1304
    %1306 = vmatprep.mubr.bf16.mxu0 %v821
    %1307 = vmatmul.mubr.bf16.gmra.mrb[0].mxu0 %v820
    %v1308 = vpop.f32.mrb[0].mxu0
    %v1309 = vadd.f32 %v897, %v1308
    %v1310 = vpop.f32.mrb[0].mxu0
    %v1311 = vadd.f32 %v901, %v1310
    %v1312 = vpop.f32.mrb[0].mxu0
    %v1313 = vadd.f32 %v897, %v1312
    %v1314 = vpop.f32.mrb[0].mxu0
    %v1315 = vadd.f32 %v901, %v1314
    %1316 = vmatprep.mubr.bf16.mxu0 %v823
    %1317 = vmatmul.mubr.bf16.gmra.mrb[0].mxu0 %v822
    %v1318 = vpop.f32.mrb[0].mxu0
    %v1319 = vadd.f32 %v897, %v1318
    %v1320 = vpop.f32.mrb[0].mxu0
    %v1321 = vadd.f32 %v901, %v1320
    %v1322 = vpop.f32.mrb[0].mxu0
    %v1323 = vadd.f32 %v897, %v1322
    %v1324 = vpop.f32.mrb[0].mxu0
    %v1325 = vadd.f32 %v901, %v1324
    %1326 = vmatprep.mubr.bf16.mxu0 %v825
    %1327 = vmatmul.mubr.bf16.gmra.mrb[0].mxu0 %v824
    %v1328 = vpop.f32.mrb[0].mxu0
    %v1329 = vadd.f32 %v897, %v1328
    %v1330 = vpop.f32.mrb[0].mxu0
    %v1331 = vadd.f32 %v901, %v1330
    %v1332 = vpop.f32.mrb[0].mxu0
    %v1333 = vadd.f32 %v897, %v1332
    %v1334 = vpop.f32.mrb[0].mxu0
    %v1335 = vadd.f32 %v901, %v1334
    %1336 = vmatprep.mubr.bf16.mxu0 %v827
    %1337 = vmatmul.mubr.bf16.gmra.mrb[0].mxu0 %v826
    %v1338 = vpop.f32.mrb[0].mxu0
    %v1339 = vadd.f32 %v897, %v1338
    %v1340 = vpop.f32.mrb[0].mxu0
    %v1341 = vadd.f32 %v901, %v1340
    %v1342 = vpop.f32.mrb[0].mxu0
    %v1343 = vadd.f32 %v897, %v1342
    %v1344 = vpop.f32.mrb[0].mxu0
    %v1345 = vadd.f32 %v901, %v1344
    %1346 = vdwg.mxu0
    %1347 = vmatprep.subr.bf16.mxu0 %v1109
    %1348 = vmatpush1.bf16.msra.mxu0 %v1108
    %1349 = vmatprep.subr.bf16.mxu0 %v1113
    %1350 = vmatpush1.bf16.msra.mxu0 %v1112
    %1351 = vmatprep.subr.bf16.mxu0 %v1117
    %1352 = vmatpush1.bf16.msra.mxu0 %v1116
    %1353 = vmatprep.subr.bf16.mxu0 %v1121
    %1354 = vmatpush1.bf16.msra.mxu0 %v1120
    %1355 = vmatprep.subr.bf16.mxu0 %v1125
    %1356 = vmatpush1.bf16.msra.mxu0 %v1124
    %1357 = vmatprep.subr.bf16.mxu0 %v1129
    %1358 = vmatpush1.bf16.msra.mxu0 %v1128
    %1359 = vmatprep.subr.bf16.mxu0 %v1133
    %1360 = vmatpush1.bf16.msra.mxu0 %v1132
    %1361 = vmatprep.subr.bf16.mxu0 %v1137
    %1362 = vmatpush1.bf16.msra.mxu0 %v1136
    %1363 = vmatprep.subr.bf16.mxu0 %v1141
    %1364 = vmatpush1.bf16.msra.mxu0 %v1140
    %1365 = vmatprep.subr.bf16.mxu0 %v1145
    %1366 = vmatpush1.bf16.msra.mxu0 %v1144
    %1367 = vmatprep.subr.bf16.mxu0 %v1149
    %1368 = vmatpush1.bf16.msra.mxu0 %v1148
    %1369 = vmatprep.subr.bf16.mxu0 %v1153
    %1370 = vmatpush1.bf16.msra.mxu0 %v1152
    %1371 = vmatprep.subr.bf16.mxu0 %v1157
    %1372 = vmatpush1.bf16.msra.mxu0 %v1156
    %1373 = vmatprep.subr.bf16.mxu0 %v1161
    %1374 = vmatpush1.bf16.msra.mxu0 %v1160
    %1375 = vmatprep.subr.bf16.mxu0 %v1165
    %1376 = vmatpush1.bf16.msra.mxu0 %v1164
    %1377 = vmatprep.subr.bf16.mxu0 %v1169
    %1378 = vmatpush1.bf16.msra.mxu0 %v1168
    %1379 = vmatprep.mubr.bf16.mxu0 %v813
    %1380 = vmatmul.mubr.bf16.gmra.mrb[0].mxu0 %v812
    %v1381 = vpop.f32.mrb[0].mxu0
    %v1382 = vadd.f32 %v905, %v1381
    %v1383 = vpop.f32.mrb[0].mxu0
    %v1384 = vadd.f32 %v909, %v1383
    %v1385 = vpop.f32.mrb[0].mxu0
    %v1386 = vadd.f32 %v905, %v1385
    %v1387 = vpop.f32.mrb[0].mxu0
    %v1388 = vadd.f32 %v909, %v1387
    %1389 = vmatprep.mubr.bf16.mxu0 %v815
    %1390 = vmatmul.mubr.bf16.gmra.mrb[0].mxu0 %v814
    %v1391 = vpop.f32.mrb[0].mxu0
    %v1392 = vadd.f32 %v905, %v1391
    %v1393 = vpop.f32.mrb[0].mxu0
    %v1394 = vadd.f32 %v909, %v1393
    %v1395 = vpop.f32.mrb[0].mxu0
    %v1396 = vadd.f32 %v905, %v1395
    %v1397 = vpop.f32.mrb[0].mxu0
    %v1398 = vadd.f32 %v909, %v1397
    %1399 = vmatprep.mubr.bf16.mxu0 %v817
    %1400 = vmatmul.mubr.bf16.gmra.mrb[0].mxu0 %v816
    %v1401 = vpop.f32.mrb[0].mxu0
    %v1402 = vadd.f32 %v905, %v1401
    %v1403 = vpop.f32.mrb[0].mxu0
    %v1404 = vadd.f32 %v909, %v1403
    %v1405 = vpop.f32.mrb[0].mxu0
    %v1406 = vadd.f32 %v905, %v1405
    %v1407 = vpop.f32.mrb[0].mxu0
    %v1408 = vadd.f32 %v909, %v1407
    %1409 = vmatprep.mubr.bf16.mxu0 %v819
    %1410 = vmatmul.mubr.bf16.gmra.mrb[0].mxu0 %v818
    %v1411 = vpop.f32.mrb[0].mxu0
    %v1412 = vadd.f32 %v905, %v1411
    %v1413 = vpop.f32.mrb[0].mxu0
    %v1414 = vadd.f32 %v909, %v1413
    %v1415 = vpop.f32.mrb[0].mxu0
    %v1416 = vadd.f32 %v905, %v1415
    %v1417 = vpop.f32.mrb[0].mxu0
    %v1418 = vadd.f32 %v909, %v1417
    %1419 = vmatprep.mubr.bf16.mxu0 %v821
    %1420 = vmatmul.mubr.bf16.gmra.mrb[0].mxu0 %v820
    %v1421 = vpop.f32.mrb[0].mxu0
    %v1422 = vadd.f32 %v905, %v1421
    %v1423 = vpop.f32.mrb[0].mxu0
    %v1424 = vadd.f32 %v909, %v1423
    %v1425 = vpop.f32.mrb[0].mxu0
    %v1426 = vadd.f32 %v905, %v1425
    %v1427 = vpop.f32.mrb[0].mxu0
    %v1428 = vadd.f32 %v909, %v1427
    %1429 = vmatprep.mubr.bf16.mxu0 %v823
    %1430 = vmatmul.mubr.bf16.gmra.mrb[0].mxu0 %v822
    %v1431 = vpop.f32.mrb[0].mxu0
    %v1432 = vadd.f32 %v905, %v1431
    %v1433 = vpop.f32.mrb[0].mxu0
    %v1434 = vadd.f32 %v909, %v1433
    %v1435 = vpop.f32.mrb[0].mxu0
    %v1436 = vadd.f32 %v905, %v1435
    %v1437 = vpop.f32.mrb[0].mxu0
    %v1438 = vadd.f32 %v909, %v1437
    %1439 = vmatprep.mubr.bf16.mxu0 %v825
    %1440 = vmatmul.mubr.bf16.gmra.mrb[0].mxu0 %v824
    %v1441 = vpop.f32.mrb[0].mxu0
    %v1442 = vadd.f32 %v905, %v1441
    %v1443 = vpop.f32.mrb[0].mxu0
    %v1444 = vadd.f32 %v909, %v1443
    %v1445 = vpop.f32.mrb[0].mxu0
    %v1446 = vadd.f32 %v905, %v1445
    %v1447 = vpop.f32.mrb[0].mxu0
    %v1448 = vadd.f32 %v909, %v1447
    %1449 = vmatprep.mubr.bf16.mxu0 %v827
    %1450 = vmatmul.mubr.bf16.gmra.mrb[0].mxu0 %v826
    %v1451 = vpop.f32.mrb[0].mxu0
    %v1452 = vadd.f32 %v905, %v1451
    %v1453 = vpop.f32.mrb[0].mxu0
    %v1454 = vadd.f32 %v909, %v1453
    %v1455 = vpop.f32.mrb[0].mxu0
    %v1456 = vadd.f32 %v905, %v1455
    %v1457 = vpop.f32.mrb[0].mxu0
    %v1458 = vadd.f32 %v909, %v1457
    %1459 = vdwg.mxu0
    %v1460 = vpack.c.bf16 %v1273, %v1269
    %v1461 = vpack.c.bf16 %v1275, %v1271
    %v1462 = vpack.c.bf16 %v1386, %v1382
    %v1463 = vpack.c.bf16 %v1388, %v1384
    %v1464 = vpack.c.bf16 %v1283, %v1279
    %v1465 = vpack.c.bf16 %v1285, %v1281
    %v1466 = vpack.c.bf16 %v1396, %v1392
    %v1467 = vpack.c.bf16 %v1398, %v1394
    %v1468 = vpack.c.bf16 %v1293, %v1289
    %v1469 = vpack.c.bf16 %v1295, %v1291
    %v1470 = vpack.c.bf16 %v1406, %v1402
    %v1471 = vpack.c.bf16 %v1408, %v1404
    %v1472 = vpack.c.bf16 %v1303, %v1299
    %v1473 = vpack.c.bf16 %v1305, %v1301
    %v1474 = vpack.c.bf16 %v1416, %v1412
    %v1475 = vpack.c.bf16 %v1418, %v1414
    %v1476 = vpack.c.bf16 %v1313, %v1309
    %v1477 = vpack.c.bf16 %v1315, %v1311
    %v1478 = vpack.c.bf16 %v1426, %v1422
    %v1479 = vpack.c.bf16 %v1428, %v1424
    %v1480 = vpack.c.bf16 %v1323, %v1319
    %v1481 = vpack.c.bf16 %v1325, %v1321
    %v1482 = vpack.c.bf16 %v1436, %v1432
    %v1483 = vpack.c.bf16 %v1438, %v1434
    %v1484 = vpack.c.bf16 %v1333, %v1329
    %v1485 = vpack.c.bf16 %v1335, %v1331
    %v1486 = vpack.c.bf16 %v1446, %v1442
    %v1487 = vpack.c.bf16 %v1448, %v1444
    %v1488 = vpack.c.bf16 %v1343, %v1339
    %v1489 = vpack.c.bf16 %v1345, %v1341
    %v1490 = vpack.c.bf16 %v1456, %v1452
    %v1491 = vpack.c.bf16 %v1458, %v1454
    %v1524 = vunpack.c.l.b16 %v1460
    %v1525 = vunpack.c.l.b16 %v1461
    %v1526 = vunpack.c.l.b16 %v1462
    %v1527 = vunpack.c.l.b16 %v1463
    %v1528 = vunpack.c.h.b16 %v1460
    %v1529 = vunpack.c.h.b16 %v1461
    %v1530 = vunpack.c.h.b16 %v1462
    %v1531 = vunpack.c.h.b16 %v1463
    %v1532 = vunpack.c.l.b16 %v1464
    %v1533 = vunpack.c.l.b16 %v1465
    %v1534 = vunpack.c.l.b16 %v1466
    %v1535 = vunpack.c.l.b16 %v1467
    %v1536 = vunpack.c.h.b16 %v1464
    %v1537 = vunpack.c.h.b16 %v1465
    %v1538 = vunpack.c.h.b16 %v1466
    %v1539 = vunpack.c.h.b16 %v1467
    %v1540 = vunpack.c.l.b16 %v1468
    %v1541 = vunpack.c.l.b16 %v1469
    %v1542 = vunpack.c.l.b16 %v1470
    %v1543 = vunpack.c.l.b16 %v1471
    %v1544 = vunpack.c.h.b16 %v1468
    %v1545 = vunpack.c.h.b16 %v1469
    %v1546 = vunpack.c.h.b16 %v1470
    %v1547 = vunpack.c.h.b16 %v1471
    %v1548 = vunpack.c.l.b16 %v1472
    %v1549 = vunpack.c.l.b16 %v1473
    %v1550 = vunpack.c.l.b16 %v1474
    %v1551 = vunpack.c.l.b16 %v1475
    %v1552 = vunpack.c.h.b16 %v1472
    %v1553 = vunpack.c.h.b16 %v1473
    %v1554 = vunpack.c.h.b16 %v1474
    %v1555 = vunpack.c.h.b16 %v1475
    %v1556 = vunpack.c.l.b16 %v1476
    %v1557 = vunpack.c.l.b16 %v1477
    %v1558 = vunpack.c.l.b16 %v1478
    %v1559 = vunpack.c.l.b16 %v1479
    %v1560 = vunpack.c.h.b16 %v1476
    %v1561 = vunpack.c.h.b16 %v1477
    %v1562 = vunpack.c.h.b16 %v1478
    %v1563 = vunpack.c.h.b16 %v1479
    %v1564 = vunpack.c.l.b16 %v1480
    %v1565 = vunpack.c.l.b16 %v1481
    %v1566 = vunpack.c.l.b16 %v1482
    %v1567 = vunpack.c.l.b16 %v1483
    %v1568 = vunpack.c.h.b16 %v1480
    %v1569 = vunpack.c.h.b16 %v1481
    %v1570 = vunpack.c.h.b16 %v1482
    %v1571 = vunpack.c.h.b16 %v1483
    %v1572 = vunpack.c.l.b16 %v1484
    %v1573 = vunpack.c.l.b16 %v1485
    %v1574 = vunpack.c.l.b16 %v1486
    %v1575 = vunpack.c.l.b16 %v1487
    %v1576 = vunpack.c.h.b16 %v1484
    %v1577 = vunpack.c.h.b16 %v1485
    %v1578 = vunpack.c.h.b16 %v1486
    %v1579 = vunpack.c.h.b16 %v1487
    %v1580 = vunpack.c.l.b16 %v1488
    %v1581 = vunpack.c.l.b16 %v1489
    %v1582 = vunpack.c.l.b16 %v1490
    %v1583 = vunpack.c.l.b16 %v1491
    %v1584 = vunpack.c.h.b16 %v1488
    %v1585 = vunpack.c.h.b16 %v1489
    %v1586 = vunpack.c.h.b16 %v1490
    %v1587 = vunpack.c.h.b16 %v1491
    %v1588 = vpack.c.b16 %v1525, %v1524
    %v1589 = vpack.c.b16 %v1527, %v1526
    %v1590 = vpack.c.b16 %v1529, %v1528
    %v1591 = vpack.c.b16 %v1531, %v1530
    %v1592 = vpack.c.b16 %v1533, %v1532
    %v1593 = vpack.c.b16 %v1535, %v1534
    %v1594 = vpack.c.b16 %v1537, %v1536
    %v1595 = vpack.c.b16 %v1539, %v1538
    %v1596 = vpack.c.b16 %v1541, %v1540
    %v1597 = vpack.c.b16 %v1543, %v1542
    %v1598 = vpack.c.b16 %v1545, %v1544
    %v1599 = vpack.c.b16 %v1547, %v1546
    %v1600 = vpack.c.b16 %v1549, %v1548
    %v1601 = vpack.c.b16 %v1551, %v1550
    %v1602 = vpack.c.b16 %v1553, %v1552
    %v1603 = vpack.c.b16 %v1555, %v1554
    %v1604 = vpack.c.b16 %v1557, %v1556
    %v1605 = vpack.c.b16 %v1559, %v1558
    %v1606 = vpack.c.b16 %v1561, %v1560
    %v1607 = vpack.c.b16 %v1563, %v1562
    %v1608 = vpack.c.b16 %v1565, %v1564
    %v1609 = vpack.c.b16 %v1567, %v1566
    %v1610 = vpack.c.b16 %v1569, %v1568
    %v1611 = vpack.c.b16 %v1571, %v1570
    %v1612 = vpack.c.b16 %v1573, %v1572
    %v1613 = vpack.c.b16 %v1575, %v1574
    %v1614 = vpack.c.b16 %v1577, %v1576
    %v1615 = vpack.c.b16 %v1579, %v1578
    %v1616 = vpack.c.b16 %v1581, %v1580
    %v1617 = vpack.c.b16 %v1583, %v1582
    %v1618 = vpack.c.b16 %v1585, %v1584
    %v1619 = vpack.c.b16 %v1587, %v1586
    %1652 = vst [vmem:[#allocation8] sm:$0xff] %v1588
    %1653 = vst [vmem:[#allocation8 + $0x8] sm:$0xff] %v1589
    %1654 = vst [vmem:[#allocation8 + $0x10] sm:$0xff] %v1590
    %1655 = vst [vmem:[#allocation8 + $0x18] sm:$0xff] %v1591
    %1656 = vst [vmem:[#allocation8 + $0x20] sm:$0xff] %v1592
    %1657 = vst [vmem:[#allocation8 + $0x28] sm:$0xff] %v1593
    %1658 = vst [vmem:[#allocation8 + $0x30] sm:$0xff] %v1594
    %1659 = vst [vmem:[#allocation8 + $0x38] sm:$0xff] %v1595
    %1660 = vst [vmem:[#allocation8 + $0x40] sm:$0xff] %v1596
    %1661 = vst [vmem:[#allocation8 + $0x48] sm:$0xff] %v1597
    %1662 = vst [vmem:[#allocation8 + $0x50] sm:$0xff] %v1598
    %1663 = vst [vmem:[#allocation8 + $0x58] sm:$0xff] %v1599
    %1664 = vst [vmem:[#allocation8 + $0x60] sm:$0xff] %v1600
    %1665 = vst [vmem:[#allocation8 + $0x68] sm:$0xff] %v1601
    %1666 = vst [vmem:[#allocation8 + $0x70] sm:$0xff] %v1602
    %1667 = vst [vmem:[#allocation8 + $0x78] sm:$0xff] %v1603
    %1668 = vst [vmem:[#allocation8 + $0x80] sm:$0xff] %v1604
    %1669 = vst [vmem:[#allocation8 + $0x88] sm:$0xff] %v1605
    %1670 = vst [vmem:[#allocation8 + $0x90] sm:$0xff] %v1606
    %1671 = vst [vmem:[#allocation8 + $0x98] sm:$0xff] %v1607
    %1672 = vst [vmem:[#allocation8 + $0xa0] sm:$0xff] %v1608
    %1673 = vst [vmem:[#allocation8 + $0xa8] sm:$0xff] %v1609
    %1674 = vst [vmem:[#allocation8 + $0xb0] sm:$0xff] %v1610
    %1675 = vst [vmem:[#allocation8 + $0xb8] sm:$0xff] %v1611
    %1676 = vst [vmem:[#allocation8 + $0xc0] sm:$0xff] %v1612
    %1677 = vst [vmem:[#allocation8 + $0xc8] sm:$0xff] %v1613
    %1678 = vst [vmem:[#allocation8 + $0xd0] sm:$0xff] %v1614
    %1679 = vst [vmem:[#allocation8 + $0xd8] sm:$0xff] %v1615
    %1680 = vst [vmem:[#allocation8 + $0xe0] sm:$0xff] %v1616
    %1681 = vst [vmem:[#allocation8 + $0xe8] sm:$0xff] %v1617
    %1682 = vst [vmem:[#allocation8 + $0xf0] sm:$0xff] %v1618
    %1683 = vst [vmem:[#allocation8 + $0xf8] sm:$0xff] %v1619
    // Predicated region
    $region34: #{tpu_custom_call.1} parent=1 // pred_check
      _
    $region35: #{tpu_custom_call.1} parent=1 // pred_check_branch
      %1685 = sbr.rel (0) target = $region37
    $region36: #{tpu_custom_call.1} parent=1 // pred_region
      %s1687 = ssub.s32 4096, 4096
      %1688 = vsyncadd [#allocation4], %s1687
      %s1689 = sshll.u32 [#allocation8], 4
      %s1690 = int_to_ptr.vmem [resolvable:$true] %s1689
      %1695 = dma.vmem_to_hbm [thread:$0]  %s1690, 4096, %s5, [#allocation4], 256, 256, 16
    $region37: #{tpu_custom_call.1} parent=1 // pred_fallthru
      _
    // Predicated region
    $region38: #{tpu_custom_call.1} parent=1 // pred_check
      _
    $region39: #{tpu_custom_call.1} parent=1 // pred_check_branch
      %1697 = sbr.rel (0) target = $region41
    $region40: #{tpu_custom_call.1} parent=1 // pred_region
      %1698 = dma.done [#allocation4], 4096
    $region41: #{tpu_custom_call.1} parent=1 // pred_fallthru
      _
    %1699 = vsyncpa [#allocation3], 1
    %1700 = vsyncpa [#allocation6], 1
    %1701 = vsyncpa [#allocation4], 1

</llo_original>
